<compile_context>
chip_gen: v7x
topology: tpu7x:2x2x1
jax: 0.10.0
libtpu: 0.0.40
codegen_flags: <defaults>
</compile_context>

<pallas_src>
import jax
import jax.numpy as jnp
import numpy as np
from jax.experimental import pallas as pl
from jax.experimental.pallas import tpu as pltpu


def _round_up(x, m):
    return ((x + m - 1) // m) * m


def _make_kernel(n_inputs, h_out):
    """Kernel factory: n_inputs modality tiles + n_inputs fusion-weight slices."""

    def kernel(*refs):
        x_refs = refs[:n_inputs]
        w_refs = refs[n_inputs:2 * n_inputs]
        bf_ref, ws_ref, we_ref, o_ref = refs[2 * n_inputs:]

        # Fused concat + fusion Linear: y = concat(x_i) @ Wf^T + bf, computed as a sum of
        # per-modality MXU dots with f32 accumulation (weights padded to Hp lanes).
        y = bf_ref[...]                                            # [1, Hp] f32 (broadcasts)
        for x_ref, w_ref in zip(x_refs, w_refs):
            y = y + jnp.dot(x_ref[...], w_ref[...],
                            preferred_element_type=jnp.float32)    # [bm, Hp] f32

        # SENet gate: sigmoid( relu(y @ Ws^T) @ We^T ), all in f32 (parity with the
        # f32 PyTorch module; EUP/VPU epilogue is nowhere near saturated).
        g = jnp.dot(y, ws_ref[...], preferred_element_type=jnp.float32)   # [bm, Rp]
        g = jnp.maximum(g, 0.0)
        g = jnp.dot(g, we_ref[...], preferred_element_type=jnp.float32)   # [bm, Hp]
        g = jax.nn.sigmoid(g)

        # Narrow store: only the H valid lanes go to HBM (padded lanes are exact zeros
        # and are simply never written).  Output block last dim == full array last dim.
        o_ref[...] = (y * g)[:, :h_out].astype(o_ref.dtype)

    return kernel


def prepare_params(wf, bf, ws, we, input_dims, param_dtype=jnp.float32):
    """One-time parameter prep (call at parameter-load time, NOT per forward).

    wf: [H, M] fusion.weight     bf: [H]   fusion.bias
    ws: [R, H] sequeeze.weight   we: [H, R] excitation.weight
    Transposes to [in, out] layout, zero-pads H and R to multiples of 128 so every MXU
    operand is lane-dense (exact: padded columns/rows are zero and never reach the
    output), and splits the fusion weight per modality so concat is fused in-kernel.
    param_dtype=jnp.bfloat16 is accepted if narrower resident weights are desired.
    """
    H, M = wf.shape
    R = ws.shape[0]
    assert sum(input_dims) == M
    Hp = _round_up(H, 128)
    Rp = _round_up(R, 128)

    wf_t = jnp.zeros((M, Hp), param_dtype).at[:, :H].set(wf.T.astype(param_dtype))
    bf_p = jnp.zeros((1, Hp), jnp.float32).at[:, :H].set(bf.astype(jnp.float32)[None, :])
    ws_t = jnp.zeros((Hp, Rp), param_dtype).at[:H, :R].set(ws.T.astype(param_dtype))
    we_t = jnp.zeros((Rp, Hp), param_dtype).at[:R, :H].set(we.T.astype(param_dtype))

    wf_parts, off = [], 0
    for d in input_dims:
        wf_parts.append(wf_t[off:off + d])
        off += d

    return dict(wf_parts=tuple(wf_parts), bf=bf_p, ws=ws_t, we=we_t, H=H)


def concat_dense_se(inputs, params, *, block_b=1024, out_dtype=None):
    """inputs: list of [B, d_i] activations; params: output of prepare_params().

    out_dtype: defaults to the input dtype; pass jnp.bfloat16 to halve output HBM
    traffic if the consumer accepts it.
    """
    x_parts = list(inputs)
    B = x_parts[0].shape[0]
    wf_parts = params["wf_parts"]
    bf_p, ws_t, we_t, H = params["bf"], params["ws"], params["we"], params["H"]
    Hp = bf_p.shape[1]
    Rp = ws_t.shape[1]
    out_dtype = x_parts[0].dtype if out_dtype is None else out_dtype

    # Batch tile:
    #  * always a multiple of 8 sublanes (rounded up unconditionally),
    #  * capped at ceil(B/2) so the "parallel" grid keeps >= 2 steps whenever possible
    #    (v7x dual-TensorCore sharding),
    #  * default 1024 to amortize the ~0.35 us per-grid-step pipeline overhead.
    # VMEM stays tiny at these sizes (few MB at bm=1024), well under even v5e's 16 MiB
    # default scoped limit, so vmem_limit_bytes is left at its default.
    bm = min(block_b, _round_up(pl.cdiv(B, 2), 8))
    bm = max(8, _round_up(bm, 8))
    grid = (pl.cdiv(B, bm),)   # ragged last tile OK: rows are independent, OOB rows dropped

    in_specs = []
    for x in x_parts:                                     # modality tiles: batch-tiled
        in_specs.append(pl.BlockSpec((bm, x.shape[1]), lambda i: (i, 0)))
    for w in wf_parts:                                    # weights: resident across grid
        in_specs.append(pl.BlockSpec(w.shape, lambda i: (0, 0)))
    in_specs += [
        pl.BlockSpec((1, Hp), lambda i: (0, 0)),          # fusion bias (padded, f32)
        pl.BlockSpec((Hp, Rp), lambda i: (0, 0)),         # squeeze weight (T, padded)
        pl.BlockSpec((Rp, Hp), lambda i: (0, 0)),         # excitation weight (T, padded)
    ]

    out = pl.pallas_call(
        _make_kernel(len(x_parts), H),
        out_shape=jax.ShapeDtypeStruct((B, H), out_dtype),   # unpadded: no post-kernel slice
        grid_spec=pltpu.PrefetchScalarGridSpec(
            num_scalar_prefetch=0,
            grid=grid,
            in_specs=in_specs,
            # Block last dim == H == full array last dim -> legal and fully contiguous
            # per-tile HBM writeback.
            out_specs=pl.BlockSpec((bm, H), lambda i: (i, 0)),
        ),
        compiler_params=pltpu.CompilerParams(
            dimension_semantics=("parallel",),            # megacore / v7x dual-TC sharding
        ),
    )(*x_parts, *wf_parts, bf_p, ws_t, we_t)

    return out


def reference(inputs, wf, bf, ws, we):
    x = jnp.concatenate(inputs, axis=1)
    y = x @ wf.T + bf
    g = jax.nn.sigmoid(jnp.maximum(y @ ws.T, 0.0) @ we.T)
    return y * g


if __name__ == "__main__":
    # Shapes consistent with the module: two modality embeddings of width 32
    # (multimodal_hidden_size M = 64), hidden_size H = 32, se_ratio = 8 -> R = 4.
    # Batch 512 -> bm = 256 -> a 2-step "parallel" grid (both TCs busy on v7x).
    B, D1, D2 = 512, 32, 32
    M = D1 + D2
    H = 32
    RATIO = 8
    R = H // RATIO

    key = jax.random.PRNGKey(0)
    k1, k2, k3, k4, k5, k6 = jax.random.split(key, 6)

    inp1 = jax.random.normal(k1, (B, D1), dtype=jnp.float32)
    inp2 = jax.random.normal(k2, (B, D2), dtype=jnp.float32)

    # PyTorch Linear weight layout: [out_features, in_features]
    wf = jax.random.normal(k3, (H, M), dtype=jnp.float32) * 0.05   # fusion.weight
    bf = jax.random.normal(k4, (H,), dtype=jnp.float32) * 0.05     # fusion.bias
    ws = jax.random.normal(k5, (R, H), dtype=jnp.float32) * 0.05   # sequeeze.weight
    we = jax.random.normal(k6, (H, R), dtype=jnp.float32) * 0.05   # excitation.weight

    params = prepare_params(wf, bf, ws, we, input_dims=(D1, D2))   # one-time prep

    out = concat_dense_se([inp1, inp2], params)
    out = jax.block_until_ready(out)
    assert out.shape == (B, H)

    ref = reference([inp1, inp2], wf, bf, ws, we)
    # MXU default-precision matmuls -> relaxed tolerance vs the pure-f32 reference.
    np.testing.assert_allclose(np.asarray(out), np.asarray(ref), rtol=2e-2, atol=2e-2)

    print("KERNEL_OK")
</pallas_src>

<mosaic_0001>
module attributes {stable_mosaic.version = 11 : i64} {
  func.func @kernel(%arg0: i32, %arg1: memref<256x32xf32, #tpu.memory_space<vmem>>, %arg2: memref<256x32xf32, #tpu.memory_space<vmem>>, %arg3: memref<32x128xf32, #tpu.memory_space<vmem>>, %arg4: memref<32x128xf32, #tpu.memory_space<vmem>>, %arg5: memref<1x128xf32, #tpu.memory_space<vmem>>, %arg6: memref<128x128xf32, #tpu.memory_space<vmem>>, %arg7: memref<128x128xf32, #tpu.memory_space<vmem>>, %arg8: memref<256x32xf32, #tpu.memory_space<vmem>>) attributes {dimension_semantics = [#tpu.dimension_semantics<parallel>], iteration_bounds = array<i64: 2>, scalar_prefetch = 0 : i64, scratch_operands = 0 : i64, tpu.core_type = #tpu.core_type<tc>, window_params = [{transform_indices = @transform_0, window_bounds = array<i64: 256, 32>}, {transform_indices = @transform_1, window_bounds = array<i64: 256, 32>}, {pipeline_mode = #tpu.pipeline_mode<synchronous>, transform_indices = @transform_2, window_bounds = array<i64: 32, 128>}, {pipeline_mode = #tpu.pipeline_mode<synchronous>, transform_indices = @transform_3, window_bounds = array<i64: 32, 128>}, {pipeline_mode = #tpu.pipeline_mode<synchronous>, transform_indices = @transform_4, window_bounds = array<i64: 1, 128>}, {pipeline_mode = #tpu.pipeline_mode<synchronous>, transform_indices = @transform_5, window_bounds = array<i64: 128, 128>}, {pipeline_mode = #tpu.pipeline_mode<synchronous>, transform_indices = @transform_6, window_bounds = array<i64: 128, 128>}, {transform_indices = @transform_7, window_bounds = array<i64: 256, 32>}]} {
    %c0 = arith.constant 0 : index
    %c0_0 = arith.constant 0 : index
    %0 = vector.load %arg5[%c0, %c0_0] : memref<1x128xf32, #tpu.memory_space<vmem>>, vector<1x128xf32>
    %c0_1 = arith.constant 0 : index
    %c0_2 = arith.constant 0 : index
    %1 = vector.load %arg1[%c0_1, %c0_2] : memref<256x32xf32, #tpu.memory_space<vmem>>, vector<256x32xf32>
    %c0_3 = arith.constant 0 : index
    %c0_4 = arith.constant 0 : index
    %2 = vector.load %arg3[%c0_3, %c0_4] : memref<32x128xf32, #tpu.memory_space<vmem>>, vector<32x128xf32>
    %cst = arith.constant dense<0.000000e+00> : vector<256x128xf32>
    %3 = tpu.matmul %1, %2, %cst {dimension_numbers = #tpu.dot_dimension_numbers<[1], [0], [0], [1], [0, 0, 1, 1], [], []>} : vector<256x32xf32>, vector<32x128xf32>, vector<256x128xf32> -> vector<256x128xf32>
    %4 = vector.broadcast %0 : vector<1x128xf32> to vector<256x128xf32>
    %5 = arith.addf %4, %3 : vector<256x128xf32>
    %c0_5 = arith.constant 0 : index
    %c0_6 = arith.constant 0 : index
    %6 = vector.load %arg2[%c0_5, %c0_6] : memref<256x32xf32, #tpu.memory_space<vmem>>, vector<256x32xf32>
    %c0_7 = arith.constant 0 : index
    %c0_8 = arith.constant 0 : index
    %7 = vector.load %arg4[%c0_7, %c0_8] : memref<32x128xf32, #tpu.memory_space<vmem>>, vector<32x128xf32>
    %cst_9 = arith.constant dense<0.000000e+00> : vector<256x128xf32>
    %8 = tpu.matmul %6, %7, %cst_9 {dimension_numbers = #tpu.dot_dimension_numbers<[1], [0], [0], [1], [0, 0, 1, 1], [], []>} : vector<256x32xf32>, vector<32x128xf32>, vector<256x128xf32> -> vector<256x128xf32>
    %9 = arith.addf %5, %8 : vector<256x128xf32>
    %c0_10 = arith.constant 0 : index
    %c0_11 = arith.constant 0 : index
    %10 = vector.load %arg6[%c0_10, %c0_11] : memref<128x128xf32, #tpu.memory_space<vmem>>, vector<128x128xf32>
    %cst_12 = arith.constant dense<0.000000e+00> : vector<256x128xf32>
    %11 = tpu.matmul %9, %10, %cst_12 {dimension_numbers = #tpu.dot_dimension_numbers<[1], [0], [0], [1], [0, 0, 1, 1], [], []>} : vector<256x128xf32>, vector<128x128xf32>, vector<256x128xf32> -> vector<256x128xf32>
    %cst_13 = arith.constant 0.000000e+00 : f32
    %12 = vector.broadcast %cst_13 : f32 to vector<256x128xf32>
    %13 = arith.maximumf %11, %12 : vector<256x128xf32>
    %c0_14 = arith.constant 0 : index
    %c0_15 = arith.constant 0 : index
    %14 = vector.load %arg7[%c0_14, %c0_15] : memref<128x128xf32, #tpu.memory_space<vmem>>, vector<128x128xf32>
    %cst_16 = arith.constant dense<0.000000e+00> : vector<256x128xf32>
    %15 = tpu.matmul %13, %14, %cst_16 {dimension_numbers = #tpu.dot_dimension_numbers<[1], [0], [0], [1], [0, 0, 1, 1], [], []>} : vector<256x128xf32>, vector<128x128xf32>, vector<256x128xf32> -> vector<256x128xf32>
    %16 = arith.negf %15 : vector<256x128xf32>
    %17 = math.exp %16 : vector<256x128xf32>
    %cst_17 = arith.constant 1.000000e+00 : f32
    %18 = vector.broadcast %cst_17 : f32 to vector<256x128xf32>
    %19 = arith.addf %18, %17 : vector<256x128xf32>
    %20 = arith.divf %18, %19 : vector<256x128xf32>
    %21 = arith.mulf %9, %20 : vector<256x128xf32>
    %22 = vector.extract_strided_slice %21 {offsets = [0, 0], sizes = [256, 32], strides = [1, 1]} : vector<256x128xf32> to vector<256x32xf32>
    %c0_18 = arith.constant 0 : index
    %c0_19 = arith.constant 0 : index
    %23 = vector.load %arg8[%c0_18, %c0_19] : memref<256x32xf32, #tpu.memory_space<vmem>>, vector<256x32xf32>
    tpu.vector_store %arg8[%c0_18, %c0_19], %22 {strides = array<i32>} : memref<256x32xf32, #tpu.memory_space<vmem>>, vector<256x32xf32>,
    return
  }
  func.func @transform_0(%arg0: i32) -> (i32, i32) {
    %c0_i32 = arith.constant 0 : i32
    %c0_i32_0 = arith.constant 0 : i32
    return %arg0, %c0_i32 : i32, i32
  }
  func.func @transform_1(%arg0: i32) -> (i32, i32) {
    %c0_i32 = arith.constant 0 : i32
    %c0_i32_0 = arith.constant 0 : i32
    return %arg0, %c0_i32 : i32, i32
  }
  func.func @transform_2(%arg0: i32) -> (i32, i32) {
    %c0_i32 = arith.constant 0 : i32
    %c0_i32_0 = arith.constant 0 : i32
    %c0_i32_1 = arith.constant 0 : i32
    return %c0_i32, %c0_i32_0 : i32, i32
  }
  func.func @transform_3(%arg0: i32) -> (i32, i32) {
    %c0_i32 = arith.constant 0 : i32
    %c0_i32_0 = arith.constant 0 : i32
    %c0_i32_1 = arith.constant 0 : i32
    return %c0_i32, %c0_i32_0 : i32, i32
  }
  func.func @transform_4(%arg0: i32) -> (i32, i32) {
    %c0_i32 = arith.constant 0 : i32
    %c0_i32_0 = arith.constant 0 : i32
    %c0_i32_1 = arith.constant 0 : i32
    return %c0_i32, %c0_i32_0 : i32, i32
  }
  func.func @transform_5(%arg0: i32) -> (i32, i32) {
    %c0_i32 = arith.constant 0 : i32
    %c0_i32_0 = arith.constant 0 : i32
    %c0_i32_1 = arith.constant 0 : i32
    return %c0_i32, %c0_i32_0 : i32, i32
  }
  func.func @transform_6(%arg0: i32) -> (i32, i32) {
    %c0_i32 = arith.constant 0 : i32
    %c0_i32_0 = arith.constant 0 : i32
    %c0_i32_1 = arith.constant 0 : i32
    return %c0_i32, %c0_i32_0 : i32, i32
  }
  func.func @transform_7(%arg0: i32) -> (i32, i32) {
    %c0_i32 = arith.constant 0 : i32
    %c0_i32_0 = arith.constant 0 : i32
    return %arg0, %c0_i32 : i32, i32
  }
}

</mosaic_0001>

<llo_original>
// kernel: tpu_custom_call.1
$region0: #{tpu_custom_call.1}
  #allocation0 [shape = 'u32[]', space=smem, size = 0x4, offset = 0x4, fixed_abs, tag = 'smem constant byte address 0x4 - core index']
  #allocation1 [shape = 'u32[144,128]{1,0:T(1,128)}', space=vmem, size = 0x12000, scoped, tag = 'internal scratch']
  %s0 = inlined_call_operand.vmem [shape: f32[512,32], index: 0, kind: input, shape index: {}]
  %s1 = inlined_call_operand.vmem [shape: f32[512,32], index: 1, kind: input, shape index: {}]
  %s2 = inlined_call_operand.vmem [shape: f32[32,128], index: 2, kind: input, shape index: {}]
  %s3 = inlined_call_operand.vmem [shape: f32[32,128], index: 3, kind: input, shape index: {}]
  %s4 = inlined_call_operand.vmem [shape: f32[1,128], index: 4, kind: input, shape index: {}]
  %s5 = inlined_call_operand.vmem [shape: f32[128,128], index: 5, kind: input, shape index: {}]
  %s6 = inlined_call_operand.vmem [shape: f32[128,128], index: 6, kind: input, shape index: {}]
  %s7 = inlined_call_operand.vmem [shape: f32[512,32], index: 7, kind: output, shape index: {}]
  %s8 = sld [smem:[#allocation0]]
  $region61: #{tpu_custom_call.1} parent=0
    _
  %s10 = ssub.s32 1, %s8
  %s11 = scalar_select 0, %s10, %s8
  loop: start=0, step=1, limit=4
  $region2: #{tpu_custom_call.1} parent=0 // loop_pre_header
    _
  $region3: #{tpu_custom_call.1} parent=0 // loop_header
    %s13 = sphi 0, %s17
    %p14 = scmp.ge.s32.totalorder %s13, 4
    %s23 = sphi 0, %s25
    %s26 = sphi 0, %s23
    %s27 = sphi 0, %s26
    %s43 = sphi 0, %s27
    %s49 = sphi 0, %s51
    %s52 = sphi 0, %s49
    %s53 = sphi 0, %s52
    %s69 = sphi 0, %s53
    %s73 = sphi 0, %s73
    %s75 = sphi 0, %s73
    %s76 = sphi 0, %s75
    %s90 = sphi 0, %s76
    %s94 = sphi 0, %s94
    %s96 = sphi 0, %s94
    %s97 = sphi 0, %s96
    %s111 = sphi 0, %s97
    %s115 = sphi 0, %s115
    %s117 = sphi 0, %s115
    %s118 = sphi 0, %s117
    %s132 = sphi 0, %s118
    %s136 = sphi 0, %s136
    %s138 = sphi 0, %s136
    %s139 = sphi 0, %s138
    %s153 = sphi 0, %s139
    %s157 = sphi 0, %s157
    %s159 = sphi 0, %s157
    %s160 = sphi 0, %s159
    %s174 = sphi 0, %s160
    %s180 = sphi 0, %s182
    %s183 = sphi 0, %s180
    %s184 = sphi 0, %s183
    %s200 = sphi 0, %s184
  $region4: #{tpu_custom_call.1} parent=0 // loop_header_branch
    %16 = sbr.rel (%p14) target = $region8
  $region5: #{tpu_custom_call.1} parent=0 // loop_body
    %s18 = ssub.s32 %s13, 1
    %s19 = ssub.s32 %s13, 2
    %s20 = sadd.s32 %s13, 1
    %s21 = ssub.s32 %s13, %s20
    %p22 = scmp.eq.s32.totalorder %s21, 0
    %s24 = sadd.s32 %s23, 1
    %s25 = scalar_select %p22, %s23, %s24
    %p28 = pneg %p22
    %p29 = scmp.eq.s32.totalorder %s13, 1
    %p30 = por %p28, %p29
    %p31 = scmp.ne.s32.totalorder %s23, %s26
    %p32 = scmp.eq.s32.totalorder %s13, 0
    %p33 = por %p31, %p32
    %p34 = scmp.ne.s32.totalorder %s23, %s26
    %p35 = scmp.eq.s32.totalorder %s18, 1
    %p36 = por %p34, %p35
    %p37 = scmp.ne.s32.totalorder %s26, %s27
    %p38 = scmp.eq.s32.totalorder %s18, 0
    %p39 = por %p37, %p38
    %p40 = scmp.ne.s32.totalorder %s26, %s27
    %p41 = scmp.eq.s32.totalorder %s19, 1
    %p42 = por %p40, %p41
    %p44 = scmp.ne.s32.totalorder %s27, %s43
    %p45 = scmp.eq.s32.totalorder %s19, 0
    %p46 = por %p44, %p45
    %s47 = ssub.s32 %s13, %s20
    %p48 = scmp.eq.s32.totalorder %s47, 0
    %s50 = sadd.s32 %s49, 1
    %s51 = scalar_select %p48, %s49, %s50
    %p54 = pneg %p48
    %p55 = scmp.eq.s32.totalorder %s13, 1
    %p56 = por %p54, %p55
    %p57 = scmp.ne.s32.totalorder %s49, %s52
    %p58 = scmp.eq.s32.totalorder %s13, 0
    %p59 = por %p57, %p58
    %p60 = scmp.ne.s32.totalorder %s49, %s52
    %p61 = scmp.eq.s32.totalorder %s18, 1
    %p62 = por %p60, %p61
    %p63 = scmp.ne.s32.totalorder %s52, %s53
    %p64 = scmp.eq.s32.totalorder %s18, 0
    %p65 = por %p63, %p64
    %p66 = scmp.ne.s32.totalorder %s52, %s53
    %p67 = scmp.eq.s32.totalorder %s19, 1
    %p68 = por %p66, %p67
    %p70 = scmp.ne.s32.totalorder %s53, %s69
    %p71 = scmp.eq.s32.totalorder %s19, 0
    %p72 = por %p70, %p71
    %s74 = sadd.s32 %s73, 1
    %p77 = scmp.eq.s32.totalorder %s13, 1
    %p78 = scmp.ne.s32.totalorder %s73, %s75
    %p79 = scmp.eq.s32.totalorder %s13, 0
    %p80 = por %p78, %p79
    %p81 = scmp.ne.s32.totalorder %s73, %s75
    %p82 = scmp.eq.s32.totalorder %s18, 1
    %p83 = por %p81, %p82
    %p84 = scmp.ne.s32.totalorder %s75, %s76
    %p85 = scmp.eq.s32.totalorder %s18, 0
    %p86 = por %p84, %p85
    %p87 = scmp.ne.s32.totalorder %s75, %s76
    %p88 = scmp.eq.s32.totalorder %s19, 1
    %p89 = por %p87, %p88
    %p91 = scmp.ne.s32.totalorder %s76, %s90
    %p92 = scmp.eq.s32.totalorder %s19, 0
    %p93 = por %p91, %p92
    %s95 = sadd.s32 %s94, 1
    %p98 = scmp.eq.s32.totalorder %s13, 1
    %p99 = scmp.ne.s32.totalorder %s94, %s96
    %p100 = scmp.eq.s32.totalorder %s13, 0
    %p101 = por %p99, %p100
    %p102 = scmp.ne.s32.totalorder %s94, %s96
    %p103 = scmp.eq.s32.totalorder %s18, 1
    %p104 = por %p102, %p103
    %p105 = scmp.ne.s32.totalorder %s96, %s97
    %p106 = scmp.eq.s32.totalorder %s18, 0
    %p107 = por %p105, %p106
    %p108 = scmp.ne.s32.totalorder %s96, %s97
    %p109 = scmp.eq.s32.totalorder %s19, 1
    %p110 = por %p108, %p109
    %p112 = scmp.ne.s32.totalorder %s97, %s111
    %p113 = scmp.eq.s32.totalorder %s19, 0
    %p114 = por %p112, %p113
    %s116 = sadd.s32 %s115, 1
    %p119 = scmp.eq.s32.totalorder %s13, 1
    %p120 = scmp.ne.s32.totalorder %s115, %s117
    %p121 = scmp.eq.s32.totalorder %s13, 0
    %p122 = por %p120, %p121
    %p123 = scmp.ne.s32.totalorder %s115, %s117
    %p124 = scmp.eq.s32.totalorder %s18, 1
    %p125 = por %p123, %p124
    %p126 = scmp.ne.s32.totalorder %s117, %s118
    %p127 = scmp.eq.s32.totalorder %s18, 0
    %p128 = por %p126, %p127
    %p129 = scmp.ne.s32.totalorder %s117, %s118
    %p130 = scmp.eq.s32.totalorder %s19, 1
    %p131 = por %p129, %p130
    %p133 = scmp.ne.s32.totalorder %s118, %s132
    %p134 = scmp.eq.s32.totalorder %s19, 0
    %p135 = por %p133, %p134
    %s137 = sadd.s32 %s136, 1
    %p140 = scmp.eq.s32.totalorder %s13, 1
    %p141 = scmp.ne.s32.totalorder %s136, %s138
    %p142 = scmp.eq.s32.totalorder %s13, 0
    %p143 = por %p141, %p142
    %p144 = scmp.ne.s32.totalorder %s136, %s138
    %p145 = scmp.eq.s32.totalorder %s18, 1
    %p146 = por %p144, %p145
    %p147 = scmp.ne.s32.totalorder %s138, %s139
    %p148 = scmp.eq.s32.totalorder %s18, 0
    %p149 = por %p147, %p148
    %p150 = scmp.ne.s32.totalorder %s138, %s139
    %p151 = scmp.eq.s32.totalorder %s19, 1
    %p152 = por %p150, %p151
    %p154 = scmp.ne.s32.totalorder %s139, %s153
    %p155 = scmp.eq.s32.totalorder %s19, 0
    %p156 = por %p154, %p155
    %s158 = sadd.s32 %s157, 1
    %p161 = scmp.eq.s32.totalorder %s13, 1
    %p162 = scmp.ne.s32.totalorder %s157, %s159
    %p163 = scmp.eq.s32.totalorder %s13, 0
    %p164 = por %p162, %p163
    %p165 = scmp.ne.s32.totalorder %s157, %s159
    %p166 = scmp.eq.s32.totalorder %s18, 1
    %p167 = por %p165, %p166
    %p168 = scmp.ne.s32.totalorder %s159, %s160
    %p169 = scmp.eq.s32.totalorder %s18, 0
    %p170 = por %p168, %p169
    %p171 = scmp.ne.s32.totalorder %s159, %s160
    %p172 = scmp.eq.s32.totalorder %s19, 1
    %p173 = por %p171, %p172
    %p175 = scmp.ne.s32.totalorder %s160, %s174
    %p176 = scmp.eq.s32.totalorder %s19, 0
    %p177 = por %p175, %p176
    %s178 = ssub.s32 %s13, %s20
    %p179 = scmp.eq.s32.totalorder %s178, 0
    %s181 = sadd.s32 %s180, 1
    %s182 = scalar_select %p179, %s180, %s181
    %p185 = pneg %p179
    %p186 = scmp.eq.s32.totalorder %s13, 1
    %p187 = por %p185, %p186
    %p188 = scmp.ne.s32.totalorder %s180, %s183
    %p189 = scmp.eq.s32.totalorder %s13, 0
    %p190 = por %p188, %p189
    %p191 = scmp.ne.s32.totalorder %s180, %s183
    %p192 = scmp.eq.s32.totalorder %s18, 1
    %p193 = por %p191, %p192
    %p194 = scmp.ne.s32.totalorder %s183, %s184
    %p195 = scmp.eq.s32.totalorder %s18, 0
    %p196 = por %p194, %p195
    %p197 = scmp.ne.s32.totalorder %s183, %s184
    %p198 = scmp.eq.s32.totalorder %s19, 1
    %p199 = por %p197, %p198
    %p201 = scmp.ne.s32.totalorder %s184, %s200
    %p202 = scmp.eq.s32.totalorder %s19, 0
    %p203 = por %p201, %p202
    %p204 = scmp.le.s32.totalorder 1, %s13
    %p205 = scmp.lt.s32.totalorder %s13, 3
    %p206 = pnand %p204, %p205
    %p207 = pneg %p206
    // Predicated region
    $region9: #{tpu_custom_call.1} parent=5 // pred_check
      _
    $region10: #{tpu_custom_call.1} parent=5 // pred_check_branch
      %209 = sbr.rel (%p206) target = $region12
    $region11: #{tpu_custom_call.1} parent=5 // pred_region
      %s210 = ssub.s32 %s13, 1
      // Predicated region
      $region13: #{tpu_custom_call.1} parent=11 // pred_check
        %p211 = pneg %p86
      $region14: #{tpu_custom_call.1} parent=11 // pred_check_branch
        %213 = sbr.rel (%p211) target = $region16
      $region15: #{tpu_custom_call.1} parent=11 // pred_region
        _
      $region16: #{tpu_custom_call.1} parent=11 // pred_fallthru
        _
      // Predicated region
      $region17: #{tpu_custom_call.1} parent=11 // pred_check
        %p214 = pneg %p107
      $region18: #{tpu_custom_call.1} parent=11 // pred_check_branch
        %216 = sbr.rel (%p214) target = $region20
      $region19: #{tpu_custom_call.1} parent=11 // pred_region
        _
      $region20: #{tpu_custom_call.1} parent=11 // pred_fallthru
        _
      // Predicated region
      $region21: #{tpu_custom_call.1} parent=11 // pred_check
        %p217 = pneg %p128
      $region22: #{tpu_custom_call.1} parent=11 // pred_check_branch
        %219 = sbr.rel (%p217) target = $region24
      $region23: #{tpu_custom_call.1} parent=11 // pred_region
        _
      $region24: #{tpu_custom_call.1} parent=11 // pred_fallthru
        _
      // Predicated region
      $region25: #{tpu_custom_call.1} parent=11 // pred_check
        %p220 = pneg %p149
      $region26: #{tpu_custom_call.1} parent=11 // pred_check_branch
        %222 = sbr.rel (%p220) target = $region28
      $region27: #{tpu_custom_call.1} parent=11 // pred_region
        _
      $region28: #{tpu_custom_call.1} parent=11 // pred_fallthru
        _
      // Predicated region
      $region29: #{tpu_custom_call.1} parent=11 // pred_check
        %p223 = pneg %p170
      $region30: #{tpu_custom_call.1} parent=11 // pred_check_branch
        %225 = sbr.rel (%p223) target = $region32
      $region31: #{tpu_custom_call.1} parent=11 // pred_region
        _
      $region32: #{tpu_custom_call.1} parent=11 // pred_fallthru
        _
    $region12: #{tpu_custom_call.1} parent=5 // pred_fallthru
      _
    %p226 = scmp.lt.s32.totalorder %s13, 2
    // Predicated region
    $region33: #{tpu_custom_call.1} parent=5 // pred_check
      %p227 = pneg %p226
    $region34: #{tpu_custom_call.1} parent=5 // pred_check_branch
      %229 = sbr.rel (%p227) target = $region36
    $region35: #{tpu_custom_call.1} parent=5 // pred_region
      // Predicated region
      $region37: #{tpu_custom_call.1} parent=35 // pred_check
        %p230 = pneg %p33
      $region38: #{tpu_custom_call.1} parent=35 // pred_check_branch
        %232 = sbr.rel (%p230) target = $region40
      $region39: #{tpu_custom_call.1} parent=35 // pred_region
        %s233 = smul.u32 32, %s13
        %p234 = scmp.lt.s32.totalorder %s233, 63
        %s235 = scalar_select %p234, %s233, 63
        %s236 = smul.addr %s235, 8
        %s237 = scalar_lea.vmem %s0, %s236
        %s238 = smul.u32 32, %s13
      $region40: #{tpu_custom_call.1} parent=35 // pred_fallthru
        _
      // Predicated region
      $region41: #{tpu_custom_call.1} parent=35 // pred_check
        %p239 = pneg %p59
      $region42: #{tpu_custom_call.1} parent=35 // pred_check_branch
        %241 = sbr.rel (%p239) target = $region44
      $region43: #{tpu_custom_call.1} parent=35 // pred_region
        %s242 = smul.u32 32, %s13
        %p243 = scmp.lt.s32.totalorder %s242, 63
        %s244 = scalar_select %p243, %s242, 63
        %s245 = smul.addr %s244, 8
        %s246 = scalar_lea.vmem %s1, %s245
        %s247 = smul.u32 32, %s13
      $region44: #{tpu_custom_call.1} parent=35 // pred_fallthru
        _
    $region36: #{tpu_custom_call.1} parent=5 // pred_fallthru
      _
    %p248 = scmp.le.s32.totalorder 1, %s13
    %p249 = scmp.lt.s32.totalorder %s13, 3
    %p250 = pnand %p248, %p249
    %p251 = pneg %p250
    // Predicated region
    $region45: #{tpu_custom_call.1} parent=5 // pred_check
      _
    $region46: #{tpu_custom_call.1} parent=5 // pred_check_branch
      %253 = sbr.rel (%p250) target = $region48
    $region47: #{tpu_custom_call.1} parent=5 // pred_region
      %s254 = ssub.s32 %s13, 1
      %s255 = smul.u32 32, %s18
      %p256 = scmp.lt.s32.totalorder %s255, 63
      %s257 = scalar_select %p256, %s255, 63
      %s258 = smul.addr %s257, 8
      %s259 = scalar_lea.vmem %s0, %s258
      %p260 = pneg %p39
      %p261 = pneg %p36
      %s262 = smul.u32 32, %s18
      %p263 = scmp.lt.s32.totalorder %s262, 63
      %s264 = scalar_select %p263, %s262, 63
      %s265 = smul.addr %s264, 8
      %s266 = scalar_lea.vmem %s1, %s265
      %p267 = pneg %p65
      %p268 = pneg %p62
      %p269 = pneg %p86
      %p270 = pneg %p83
      %p271 = pneg %p107
      %p272 = pneg %p104
      %p273 = pneg %p128
      %p274 = pneg %p125
      %p275 = pneg %p149
      %p276 = pneg %p146
      %p277 = pneg %p170
      %p278 = pneg %p167
      %p279 = pneg %p196
      %p280 = pneg %p193
      %s281 = smul.u32 32, %s18
      %p282 = scmp.lt.s32.totalorder %s281, 63
      %s283 = scalar_select %p282, %s281, 63
      %s284 = smul.addr %s283, 8
      %s285 = scalar_lea.vmem %s7, %s284
      %s286 = smul.u32 32, %s18
      %p287 = scmp.lt.s32.totalorder %s286, 63
      %s288 = scalar_select %p287, %s286, 63
      %s289 = smul.addr %s288, 8
      %s290 = scalar_lea.vmem %s0, %s289
      %s291 = smul.u32 32, %s18
      %s292 = smul.u32 32, %s18
      %p293 = scmp.lt.s32.totalorder %s292, 63
      %s294 = scalar_select %p293, %s292, 63
      %s295 = smul.addr %s294, 8
      %s296 = scalar_lea.vmem %s1, %s295
      %s297 = smul.u32 32, %s18
      %s298 = smul.u32 32, %s18
      %p299 = scmp.lt.s32.totalorder %s298, 63
      %s300 = scalar_select %p299, %s298, 63
      %s301 = smul.addr %s300, 8
      %s302 = scalar_lea.vmem %s7, %s301
      %s303 = smul.u32 32, %s18
      %v304 = vld [vmem:[%s4] sm:$0x1]
      %v305 = vld [vmem:[%s290] sm:$0xff]
      %v306 = vld [vmem:[%s290 + $0x8] sm:$0xff]
      %v307 = vld [vmem:[%s290 + $0x10] sm:$0xff]
      %v308 = vld [vmem:[%s290 + $0x18] sm:$0xff]
      %v309 = vld [vmem:[%s290 + $0x20] sm:$0xff]
      %v310 = vld [vmem:[%s290 + $0x28] sm:$0xff]
      %v311 = vld [vmem:[%s290 + $0x30] sm:$0xff]
      %v312 = vld [vmem:[%s290 + $0x38] sm:$0xff]
      %v313 = vld [vmem:[%s290 + $0x40] sm:$0xff]
      %v314 = vld [vmem:[%s290 + $0x48] sm:$0xff]
      %v315 = vld [vmem:[%s290 + $0x50] sm:$0xff]
      %v316 = vld [vmem:[%s290 + $0x58] sm:$0xff]
      %v317 = vld [vmem:[%s290 + $0x60] sm:$0xff]
      %v318 = vld [vmem:[%s290 + $0x68] sm:$0xff]
      %v319 = vld [vmem:[%s290 + $0x70] sm:$0xff]
      %v320 = vld [vmem:[%s290 + $0x78] sm:$0xff]
      %v321 = vld [vmem:[%s290 + $0x80] sm:$0xff]
      %v322 = vld [vmem:[%s290 + $0x88] sm:$0xff]
      %v323 = vld [vmem:[%s290 + $0x90] sm:$0xff]
      %v324 = vld [vmem:[%s290 + $0x98] sm:$0xff]
      %v325 = vld [vmem:[%s290 + $0xa0] sm:$0xff]
      %v326 = vld [vmem:[%s290 + $0xa8] sm:$0xff]
      %v327 = vld [vmem:[%s290 + $0xb0] sm:$0xff]
      %v328 = vld [vmem:[%s290 + $0xb8] sm:$0xff]
      %v329 = vld [vmem:[%s290 + $0xc0] sm:$0xff]
      %v330 = vld [vmem:[%s290 + $0xc8] sm:$0xff]
      %v331 = vld [vmem:[%s290 + $0xd0] sm:$0xff]
      %v332 = vld [vmem:[%s290 + $0xd8] sm:$0xff]
      %v333 = vld [vmem:[%s290 + $0xe0] sm:$0xff]
      %v334 = vld [vmem:[%s290 + $0xe8] sm:$0xff]
      %v335 = vld [vmem:[%s290 + $0xf0] sm:$0xff]
      %v336 = vld [vmem:[%s290 + $0xf8] sm:$0xff]
      %v337 = vld [vmem:[%s2] sm:$0xff]
      %v338 = vld [vmem:[%s2 + $0x8] sm:$0xff]
      %v339 = vld [vmem:[%s2 + $0x10] sm:$0xff]
      %v340 = vld [vmem:[%s2 + $0x18] sm:$0xff]
      %vm341 = vcmask 261120
      %v343 = vsel %vm341, %v305, 0
      %v346 = vsel %vm341, %v306, 0
      %v349 = vsel %vm341, %v307, 0
      %v352 = vsel %vm341, %v308, 0
      %v355 = vsel %vm341, %v309, 0
      %v358 = vsel %vm341, %v310, 0
      %v361 = vsel %vm341, %v311, 0
      %v364 = vsel %vm341, %v312, 0
      %v367 = vsel %vm341, %v313, 0
      %v370 = vsel %vm341, %v314, 0
      %v373 = vsel %vm341, %v315, 0
      %v376 = vsel %vm341, %v316, 0
      %v379 = vsel %vm341, %v317, 0
      %v382 = vsel %vm341, %v318, 0
      %v385 = vsel %vm341, %v319, 0
      %v388 = vsel %vm341, %v320, 0
      %v391 = vsel %vm341, %v321, 0
      %v394 = vsel %vm341, %v322, 0
      %v397 = vsel %vm341, %v323, 0
      %v400 = vsel %vm341, %v324, 0
      %v403 = vsel %vm341, %v325, 0
      %v406 = vsel %vm341, %v326, 0
      %v409 = vsel %vm341, %v327, 0
      %v412 = vsel %vm341, %v328, 0
      %v415 = vsel %vm341, %v329, 0
      %v418 = vsel %vm341, %v330, 0
      %v421 = vsel %vm341, %v331, 0
      %v424 = vsel %vm341, %v332, 0
      %v427 = vsel %vm341, %v333, 0
      %v430 = vsel %vm341, %v334, 0
      %v433 = vsel %vm341, %v335, 0
      %v436 = vsel %vm341, %v336, 0
      %438 = vmatprep.subr.mxu0 0.0
      %439 = vmatpush1.msra.mxu0 %v337
      %440 = vmatprep.subr.mxu0 0.0
      %441 = vmatpush1.msra.mxu0 %v338
      %442 = vmatprep.subr.mxu0 0.0
      %443 = vmatpush1.msra.mxu0 %v339
      %444 = vmatprep.subr.mxu0 0.0
      %445 = vmatpush1.msra.mxu0 %v340
      %446 = vmatprep.subr.mxu0 0.0
      %447 = vmatpush1.msra.mxu0 0.0
      %448 = vmatprep.subr.mxu0 0.0
      %449 = vmatpush1.msra.mxu0 0.0
      %450 = vmatprep.subr.mxu0 0.0
      %451 = vmatpush1.msra.mxu0 0.0
      %452 = vmatprep.subr.mxu0 0.0
      %453 = vmatpush1.msra.mxu0 0.0
      %454 = vmatprep.subr.mxu0 0.0
      %455 = vmatpush1.msra.mxu0 0.0
      %456 = vmatprep.subr.mxu0 0.0
      %457 = vmatpush1.msra.mxu0 0.0
      %458 = vmatprep.subr.mxu0 0.0
      %459 = vmatpush1.msra.mxu0 0.0
      %460 = vmatprep.subr.mxu0 0.0
      %461 = vmatpush1.msra.mxu0 0.0
      %462 = vmatprep.subr.mxu0 0.0
      %463 = vmatpush1.msra.mxu0 0.0
      %464 = vmatprep.subr.mxu0 0.0
      %465 = vmatpush1.msra.mxu0 0.0
      %466 = vmatprep.subr.mxu0 0.0
      %467 = vmatpush1.msra.mxu0 0.0
      %468 = vmatprep.subr.mxu0 0.0
      %469 = vmatpush1.msra.mxu0 0.0
      %470 = vmatprep.subr.mxu0 0.0
      %471 = vmatpush1.msra.mxu0 0.0
      %472 = vmatprep.subr.mxu0 0.0
      %473 = vmatpush1.msra.mxu0 0.0
      %474 = vmatprep.subr.mxu0 0.0
      %475 = vmatpush1.msra.mxu0 0.0
      %476 = vmatprep.subr.mxu0 0.0
      %477 = vmatpush1.msra.mxu0 0.0
      %478 = vmatprep.subr.mxu0 0.0
      %479 = vmatpush1.msra.mxu0 0.0
      %480 = vmatprep.subr.mxu0 0.0
      %481 = vmatpush1.msra.mxu0 0.0
      %482 = vmatprep.subr.mxu0 0.0
      %483 = vmatpush1.msra.mxu0 0.0
      %484 = vmatprep.subr.mxu0 0.0
      %485 = vmatpush1.msra.mxu0 0.0
      %486 = vmatprep.subr.mxu0 0.0
      %487 = vmatpush1.msra.mxu0 0.0
      %488 = vmatprep.subr.mxu0 0.0
      %489 = vmatpush1.msra.mxu0 0.0
      %490 = vmatprep.subr.mxu0 0.0
      %491 = vmatpush1.msra.mxu0 0.0
      %492 = vmatprep.subr.mxu0 0.0
      %493 = vmatpush1.msra.mxu0 0.0
      %494 = vmatprep.subr.mxu0 0.0
      %495 = vmatpush1.msra.mxu0 0.0
      %496 = vmatprep.subr.mxu0 0.0
      %497 = vmatpush1.msra.mxu0 0.0
      %498 = vmatprep.subr.mxu0 0.0
      %499 = vmatpush1.msra.mxu0 0.0
      %500 = vmatprep.subr.mxu0 0.0
      %501 = vmatpush1.msra.mxu0 0.0
      %502 = vmatprep.mubr.f32.mxu0 0.0
      %503 = vmatmul.mubr.f32.gmra.mrb[0].mxu0 %v343
      %v504 = vpop.f32.mrb[0].mxu0
      %v505 = vadd.f32 0.0, %v504
      %v506 = vpop.f32.mrb[0].mxu0
      %507 = vmatprep.mubr.f32.mxu0 0.0
      %508 = vmatmul.mubr.f32.gmra.mrb[0].mxu0 %v346
      %v509 = vpop.f32.mrb[0].mxu0
      %v510 = vadd.f32 0.0, %v509
      %v511 = vpop.f32.mrb[0].mxu0
      %512 = vmatprep.mubr.f32.mxu0 0.0
      %513 = vmatmul.mubr.f32.gmra.mrb[0].mxu0 %v349
      %v514 = vpop.f32.mrb[0].mxu0
      %v515 = vadd.f32 0.0, %v514
      %v516 = vpop.f32.mrb[0].mxu0
      %517 = vmatprep.mubr.f32.mxu0 0.0
      %518 = vmatmul.mubr.f32.gmra.mrb[0].mxu0 %v352
      %v519 = vpop.f32.mrb[0].mxu0
      %v520 = vadd.f32 0.0, %v519
      %v521 = vpop.f32.mrb[0].mxu0
      %522 = vmatprep.mubr.f32.mxu0 0.0
      %523 = vmatmul.mubr.f32.gmra.mrb[0].mxu0 %v355
      %v524 = vpop.f32.mrb[0].mxu0
      %v525 = vadd.f32 0.0, %v524
      %v526 = vpop.f32.mrb[0].mxu0
      %527 = vmatprep.mubr.f32.mxu0 0.0
      %528 = vmatmul.mubr.f32.gmra.mrb[0].mxu0 %v358
      %v529 = vpop.f32.mrb[0].mxu0
      %v530 = vadd.f32 0.0, %v529
      %v531 = vpop.f32.mrb[0].mxu0
      %532 = vmatprep.mubr.f32.mxu0 0.0
      %533 = vmatmul.mubr.f32.gmra.mrb[0].mxu0 %v361
      %v534 = vpop.f32.mrb[0].mxu0
      %v535 = vadd.f32 0.0, %v534
      %v536 = vpop.f32.mrb[0].mxu0
      %537 = vmatprep.mubr.f32.mxu0 0.0
      %538 = vmatmul.mubr.f32.gmra.mrb[0].mxu0 %v364
      %v539 = vpop.f32.mrb[0].mxu0
      %v540 = vadd.f32 0.0, %v539
      %v541 = vpop.f32.mrb[0].mxu0
      %542 = vmatprep.mubr.f32.mxu0 0.0
      %543 = vmatmul.mubr.f32.gmra.mrb[0].mxu0 %v367
      %v544 = vpop.f32.mrb[0].mxu0
      %v545 = vadd.f32 0.0, %v544
      %v546 = vpop.f32.mrb[0].mxu0
      %547 = vmatprep.mubr.f32.mxu0 0.0
      %548 = vmatmul.mubr.f32.gmra.mrb[0].mxu0 %v370
      %v549 = vpop.f32.mrb[0].mxu0
      %v550 = vadd.f32 0.0, %v549
      %v551 = vpop.f32.mrb[0].mxu0
      %552 = vmatprep.mubr.f32.mxu0 0.0
      %553 = vmatmul.mubr.f32.gmra.mrb[0].mxu0 %v373
      %v554 = vpop.f32.mrb[0].mxu0
      %v555 = vadd.f32 0.0, %v554
      %v556 = vpop.f32.mrb[0].mxu0
      %557 = vmatprep.mubr.f32.mxu0 0.0
      %558 = vmatmul.mubr.f32.gmra.mrb[0].mxu0 %v376
      %v559 = vpop.f32.mrb[0].mxu0
      %v560 = vadd.f32 0.0, %v559
      %v561 = vpop.f32.mrb[0].mxu0
      %562 = vmatprep.mubr.f32.mxu0 0.0
      %563 = vmatmul.mubr.f32.gmra.mrb[0].mxu0 %v379
      %v564 = vpop.f32.mrb[0].mxu0
      %v565 = vadd.f32 0.0, %v564
      %v566 = vpop.f32.mrb[0].mxu0
      %567 = vmatprep.mubr.f32.mxu0 0.0
      %568 = vmatmul.mubr.f32.gmra.mrb[0].mxu0 %v382
      %v569 = vpop.f32.mrb[0].mxu0
      %v570 = vadd.f32 0.0, %v569
      %v571 = vpop.f32.mrb[0].mxu0
      %572 = vmatprep.mubr.f32.mxu0 0.0
      %573 = vmatmul.mubr.f32.gmra.mrb[0].mxu0 %v385
      %v574 = vpop.f32.mrb[0].mxu0
      %v575 = vadd.f32 0.0, %v574
      %v576 = vpop.f32.mrb[0].mxu0
      %577 = vmatprep.mubr.f32.mxu0 0.0
      %578 = vmatmul.mubr.f32.gmra.mrb[0].mxu0 %v388
      %v579 = vpop.f32.mrb[0].mxu0
      %v580 = vadd.f32 0.0, %v579
      %v581 = vpop.f32.mrb[0].mxu0
      %582 = vmatprep.mubr.f32.mxu0 0.0
      %583 = vmatmul.mubr.f32.gmra.mrb[0].mxu0 %v391
      %v584 = vpop.f32.mrb[0].mxu0
      %v585 = vadd.f32 0.0, %v584
      %v586 = vpop.f32.mrb[0].mxu0
      %587 = vmatprep.mubr.f32.mxu0 0.0
      %588 = vmatmul.mubr.f32.gmra.mrb[0].mxu0 %v394
      %v589 = vpop.f32.mrb[0].mxu0
      %v590 = vadd.f32 0.0, %v589
      %v591 = vpop.f32.mrb[0].mxu0
      %592 = vmatprep.mubr.f32.mxu0 0.0
      %593 = vmatmul.mubr.f32.gmra.mrb[0].mxu0 %v397
      %v594 = vpop.f32.mrb[0].mxu0
      %v595 = vadd.f32 0.0, %v594
      %v596 = vpop.f32.mrb[0].mxu0
      %597 = vmatprep.mubr.f32.mxu0 0.0
      %598 = vmatmul.mubr.f32.gmra.mrb[0].mxu0 %v400
      %v599 = vpop.f32.mrb[0].mxu0
      %v600 = vadd.f32 0.0, %v599
      %v601 = vpop.f32.mrb[0].mxu0
      %602 = vmatprep.mubr.f32.mxu0 0.0
      %603 = vmatmul.mubr.f32.gmra.mrb[0].mxu0 %v403
      %v604 = vpop.f32.mrb[0].mxu0
      %v605 = vadd.f32 0.0, %v604
      %v606 = vpop.f32.mrb[0].mxu0
      %607 = vmatprep.mubr.f32.mxu0 0.0
      %608 = vmatmul.mubr.f32.gmra.mrb[0].mxu0 %v406
      %v609 = vpop.f32.mrb[0].mxu0
      %v610 = vadd.f32 0.0, %v609
      %v611 = vpop.f32.mrb[0].mxu0
      %612 = vmatprep.mubr.f32.mxu0 0.0
      %613 = vmatmul.mubr.f32.gmra.mrb[0].mxu0 %v409
      %v614 = vpop.f32.mrb[0].mxu0
      %v615 = vadd.f32 0.0, %v614
      %v616 = vpop.f32.mrb[0].mxu0
      %617 = vmatprep.mubr.f32.mxu0 0.0
      %618 = vmatmul.mubr.f32.gmra.mrb[0].mxu0 %v412
      %v619 = vpop.f32.mrb[0].mxu0
      %v620 = vadd.f32 0.0, %v619
      %v621 = vpop.f32.mrb[0].mxu0
      %622 = vmatprep.mubr.f32.mxu0 0.0
      %623 = vmatmul.mubr.f32.gmra.mrb[0].mxu0 %v415
      %v624 = vpop.f32.mrb[0].mxu0
      %v625 = vadd.f32 0.0, %v624
      %v626 = vpop.f32.mrb[0].mxu0
      %627 = vmatprep.mubr.f32.mxu0 0.0
      %628 = vmatmul.mubr.f32.gmra.mrb[0].mxu0 %v418
      %v629 = vpop.f32.mrb[0].mxu0
      %v630 = vadd.f32 0.0, %v629
      %v631 = vpop.f32.mrb[0].mxu0
      %632 = vmatprep.mubr.f32.mxu0 0.0
      %633 = vmatmul.mubr.f32.gmra.mrb[0].mxu0 %v421
      %v634 = vpop.f32.mrb[0].mxu0
      %v635 = vadd.f32 0.0, %v634
      %v636 = vpop.f32.mrb[0].mxu0
      %637 = vmatprep.mubr.f32.mxu0 0.0
      %638 = vmatmul.mubr.f32.gmra.mrb[0].mxu0 %v424
      %v639 = vpop.f32.mrb[0].mxu0
      %v640 = vadd.f32 0.0, %v639
      %v641 = vpop.f32.mrb[0].mxu0
      %642 = vmatprep.mubr.f32.mxu0 0.0
      %643 = vmatmul.mubr.f32.gmra.mrb[0].mxu0 %v427
      %v644 = vpop.f32.mrb[0].mxu0
      %v645 = vadd.f32 0.0, %v644
      %v646 = vpop.f32.mrb[0].mxu0
      %647 = vmatprep.mubr.f32.mxu0 0.0
      %648 = vmatmul.mubr.f32.gmra.mrb[0].mxu0 %v430
      %v649 = vpop.f32.mrb[0].mxu0
      %v650 = vadd.f32 0.0, %v649
      %v651 = vpop.f32.mrb[0].mxu0
      %652 = vmatprep.mubr.f32.mxu0 0.0
      %653 = vmatmul.mubr.f32.gmra.mrb[0].mxu0 %v433
      %v654 = vpop.f32.mrb[0].mxu0
      %v655 = vadd.f32 0.0, %v654
      %v656 = vpop.f32.mrb[0].mxu0
      %657 = vmatprep.mubr.f32.mxu0 0.0
      %658 = vmatmul.mubr.f32.gmra.mrb[0].mxu0 %v436
      %v659 = vpop.f32.mrb[0].mxu0
      %v660 = vadd.f32 0.0, %v659
      %v661 = vpop.f32.mrb[0].mxu0
      %662 = vdwg.mxu0
      %v664 = vlaneseq
      %v665 = vshrl.u32 %v664, 7
      %v666 = vsub.s32 0, %v665
      %v667 = vrot.slane %v304, %v666
      %v669 = vadd.f32 %v667, %v505
      %v670 = vadd.f32 %v667, %v510
      %v671 = vadd.f32 %v667, %v515
      %v672 = vadd.f32 %v667, %v520
      %v673 = vadd.f32 %v667, %v525
      %v674 = vadd.f32 %v667, %v530
      %v675 = vadd.f32 %v667, %v535
      %v676 = vadd.f32 %v667, %v540
      %v677 = vadd.f32 %v667, %v545
      %v678 = vadd.f32 %v667, %v550
      %v679 = vadd.f32 %v667, %v555
      %v680 = vadd.f32 %v667, %v560
      %v681 = vadd.f32 %v667, %v565
      %v682 = vadd.f32 %v667, %v570
      %v683 = vadd.f32 %v667, %v575
      %v684 = vadd.f32 %v667, %v580
      %v685 = vadd.f32 %v667, %v585
      %v686 = vadd.f32 %v667, %v590
      %v687 = vadd.f32 %v667, %v595
      %v688 = vadd.f32 %v667, %v600
      %v689 = vadd.f32 %v667, %v605
      %v690 = vadd.f32 %v667, %v610
      %v691 = vadd.f32 %v667, %v615
      %v692 = vadd.f32 %v667, %v620
      %v693 = vadd.f32 %v667, %v625
      %v694 = vadd.f32 %v667, %v630
      %v695 = vadd.f32 %v667, %v635
      %v696 = vadd.f32 %v667, %v640
      %v697 = vadd.f32 %v667, %v645
      %v698 = vadd.f32 %v667, %v650
      %v699 = vadd.f32 %v667, %v655
      %v700 = vadd.f32 %v667, %v660
      %v701 = vld [vmem:[%s296] sm:$0xff]
      %v702 = vld [vmem:[%s296 + $0x8] sm:$0xff]
      %v703 = vld [vmem:[%s296 + $0x10] sm:$0xff]
      %v704 = vld [vmem:[%s296 + $0x18] sm:$0xff]
      %v705 = vld [vmem:[%s296 + $0x20] sm:$0xff]
      %v706 = vld [vmem:[%s296 + $0x28] sm:$0xff]
      %v707 = vld [vmem:[%s296 + $0x30] sm:$0xff]
      %v708 = vld [vmem:[%s296 + $0x38] sm:$0xff]
      %v709 = vld [vmem:[%s296 + $0x40] sm:$0xff]
      %v710 = vld [vmem:[%s296 + $0x48] sm:$0xff]
      %v711 = vld [vmem:[%s296 + $0x50] sm:$0xff]
      %v712 = vld [vmem:[%s296 + $0x58] sm:$0xff]
      %v713 = vld [vmem:[%s296 + $0x60] sm:$0xff]
      %v714 = vld [vmem:[%s296 + $0x68] sm:$0xff]
      %v715 = vld [vmem:[%s296 + $0x70] sm:$0xff]
      %v716 = vld [vmem:[%s296 + $0x78] sm:$0xff]
      %v717 = vld [vmem:[%s296 + $0x80] sm:$0xff]
      %v718 = vld [vmem:[%s296 + $0x88] sm:$0xff]
      %v719 = vld [vmem:[%s296 + $0x90] sm:$0xff]
      %v720 = vld [vmem:[%s296 + $0x98] sm:$0xff]
      %v721 = vld [vmem:[%s296 + $0xa0] sm:$0xff]
      %v722 = vld [vmem:[%s296 + $0xa8] sm:$0xff]
      %v723 = vld [vmem:[%s296 + $0xb0] sm:$0xff]
      %v724 = vld [vmem:[%s296 + $0xb8] sm:$0xff]
      %v725 = vld [vmem:[%s296 + $0xc0] sm:$0xff]
      %v726 = vld [vmem:[%s296 + $0xc8] sm:$0xff]
      %v727 = vld [vmem:[%s296 + $0xd0] sm:$0xff]
      %v728 = vld [vmem:[%s296 + $0xd8] sm:$0xff]
      %v729 = vld [vmem:[%s296 + $0xe0] sm:$0xff]
      %v730 = vld [vmem:[%s296 + $0xe8] sm:$0xff]
      %v731 = vld [vmem:[%s296 + $0xf0] sm:$0xff]
      %v732 = vld [vmem:[%s296 + $0xf8] sm:$0xff]
      %v733 = vld [vmem:[%s3] sm:$0xff]
      %v734 = vld [vmem:[%s3 + $0x8] sm:$0xff]
      %v735 = vld [vmem:[%s3 + $0x10] sm:$0xff]
      %v736 = vld [vmem:[%s3 + $0x18] sm:$0xff]
      %v738 = vsel %vm341, %v701, 0
      %v741 = vsel %vm341, %v702, 0
      %v744 = vsel %vm341, %v703, 0
      %v747 = vsel %vm341, %v704, 0
      %v750 = vsel %vm341, %v705, 0
      %v753 = vsel %vm341, %v706, 0
      %v756 = vsel %vm341, %v707, 0
      %v759 = vsel %vm341, %v708, 0
      %v762 = vsel %vm341, %v709, 0
      %v765 = vsel %vm341, %v710, 0
      %v768 = vsel %vm341, %v711, 0
      %v771 = vsel %vm341, %v712, 0
      %v774 = vsel %vm341, %v713, 0
      %v777 = vsel %vm341, %v714, 0
      %v780 = vsel %vm341, %v715, 0
      %v783 = vsel %vm341, %v716, 0
      %v786 = vsel %vm341, %v717, 0
      %v789 = vsel %vm341, %v718, 0
      %v792 = vsel %vm341, %v719, 0
      %v795 = vsel %vm341, %v720, 0
      %v798 = vsel %vm341, %v721, 0
      %v801 = vsel %vm341, %v722, 0
      %v804 = vsel %vm341, %v723, 0
      %v807 = vsel %vm341, %v724, 0
      %v810 = vsel %vm341, %v725, 0
      %v813 = vsel %vm341, %v726, 0
      %v816 = vsel %vm341, %v727, 0
      %v819 = vsel %vm341, %v728, 0
      %v822 = vsel %vm341, %v729, 0
      %v825 = vsel %vm341, %v730, 0
      %v828 = vsel %vm341, %v731, 0
      %v831 = vsel %vm341, %v732, 0
      %833 = vmatprep.subr.mxu0 0.0
      %834 = vmatpush1.msra.mxu0 %v733
      %835 = vmatprep.subr.mxu0 0.0
      %836 = vmatpush1.msra.mxu0 %v734
      %837 = vmatprep.subr.mxu0 0.0
      %838 = vmatpush1.msra.mxu0 %v735
      %839 = vmatprep.subr.mxu0 0.0
      %840 = vmatpush1.msra.mxu0 %v736
      %841 = vmatprep.subr.mxu0 0.0
      %842 = vmatpush1.msra.mxu0 0.0
      %843 = vmatprep.subr.mxu0 0.0
      %844 = vmatpush1.msra.mxu0 0.0
      %845 = vmatprep.subr.mxu0 0.0
      %846 = vmatpush1.msra.mxu0 0.0
      %847 = vmatprep.subr.mxu0 0.0
      %848 = vmatpush1.msra.mxu0 0.0
      %849 = vmatprep.subr.mxu0 0.0
      %850 = vmatpush1.msra.mxu0 0.0
      %851 = vmatprep.subr.mxu0 0.0
      %852 = vmatpush1.msra.mxu0 0.0
      %853 = vmatprep.subr.mxu0 0.0
      %854 = vmatpush1.msra.mxu0 0.0
      %855 = vmatprep.subr.mxu0 0.0
      %856 = vmatpush1.msra.mxu0 0.0
      %857 = vmatprep.subr.mxu0 0.0
      %858 = vmatpush1.msra.mxu0 0.0
      %859 = vmatprep.subr.mxu0 0.0
      %860 = vmatpush1.msra.mxu0 0.0
      %861 = vmatprep.subr.mxu0 0.0
      %862 = vmatpush1.msra.mxu0 0.0
      %863 = vmatprep.subr.mxu0 0.0
      %864 = vmatpush1.msra.mxu0 0.0
      %865 = vmatprep.subr.mxu0 0.0
      %866 = vmatpush1.msra.mxu0 0.0
      %867 = vmatprep.subr.mxu0 0.0
      %868 = vmatpush1.msra.mxu0 0.0
      %869 = vmatprep.subr.mxu0 0.0
      %870 = vmatpush1.msra.mxu0 0.0
      %871 = vmatprep.subr.mxu0 0.0
      %872 = vmatpush1.msra.mxu0 0.0
      %873 = vmatprep.subr.mxu0 0.0
      %874 = vmatpush1.msra.mxu0 0.0
      %875 = vmatprep.subr.mxu0 0.0
      %876 = vmatpush1.msra.mxu0 0.0
      %877 = vmatprep.subr.mxu0 0.0
      %878 = vmatpush1.msra.mxu0 0.0
      %879 = vmatprep.subr.mxu0 0.0
      %880 = vmatpush1.msra.mxu0 0.0
      %881 = vmatprep.subr.mxu0 0.0
      %882 = vmatpush1.msra.mxu0 0.0
      %883 = vmatprep.subr.mxu0 0.0
      %884 = vmatpush1.msra.mxu0 0.0
      %885 = vmatprep.subr.mxu0 0.0
      %886 = vmatpush1.msra.mxu0 0.0
      %887 = vmatprep.subr.mxu0 0.0
      %888 = vmatpush1.msra.mxu0 0.0
      %889 = vmatprep.subr.mxu0 0.0
      %890 = vmatpush1.msra.mxu0 0.0
      %891 = vmatprep.subr.mxu0 0.0
      %892 = vmatpush1.msra.mxu0 0.0
      %893 = vmatprep.subr.mxu0 0.0
      %894 = vmatpush1.msra.mxu0 0.0
      %895 = vmatprep.subr.mxu0 0.0
      %896 = vmatpush1.msra.mxu0 0.0
      %897 = vmatprep.mubr.f32.mxu0 0.0
      %898 = vmatmul.mubr.f32.gmra.mrb[0].mxu0 %v738
      %v899 = vpop.f32.mrb[0].mxu0
      %v900 = vadd.f32 0.0, %v899
      %v901 = vpop.f32.mrb[0].mxu0
      %902 = vmatprep.mubr.f32.mxu0 0.0
      %903 = vmatmul.mubr.f32.gmra.mrb[0].mxu0 %v741
      %v904 = vpop.f32.mrb[0].mxu0
      %v905 = vadd.f32 0.0, %v904
      %v906 = vpop.f32.mrb[0].mxu0
      %907 = vmatprep.mubr.f32.mxu0 0.0
      %908 = vmatmul.mubr.f32.gmra.mrb[0].mxu0 %v744
      %v909 = vpop.f32.mrb[0].mxu0
      %v910 = vadd.f32 0.0, %v909
      %v911 = vpop.f32.mrb[0].mxu0
      %912 = vmatprep.mubr.f32.mxu0 0.0
      %913 = vmatmul.mubr.f32.gmra.mrb[0].mxu0 %v747
      %v914 = vpop.f32.mrb[0].mxu0
      %v915 = vadd.f32 0.0, %v914
      %v916 = vpop.f32.mrb[0].mxu0
      %917 = vmatprep.mubr.f32.mxu0 0.0
      %918 = vmatmul.mubr.f32.gmra.mrb[0].mxu0 %v750
      %v919 = vpop.f32.mrb[0].mxu0
      %v920 = vadd.f32 0.0, %v919
      %v921 = vpop.f32.mrb[0].mxu0
      %922 = vmatprep.mubr.f32.mxu0 0.0
      %923 = vmatmul.mubr.f32.gmra.mrb[0].mxu0 %v753
      %v924 = vpop.f32.mrb[0].mxu0
      %v925 = vadd.f32 0.0, %v924
      %v926 = vpop.f32.mrb[0].mxu0
      %927 = vmatprep.mubr.f32.mxu0 0.0
      %928 = vmatmul.mubr.f32.gmra.mrb[0].mxu0 %v756
      %v929 = vpop.f32.mrb[0].mxu0
      %v930 = vadd.f32 0.0, %v929
      %v931 = vpop.f32.mrb[0].mxu0
      %932 = vmatprep.mubr.f32.mxu0 0.0
      %933 = vmatmul.mubr.f32.gmra.mrb[0].mxu0 %v759
      %v934 = vpop.f32.mrb[0].mxu0
      %v935 = vadd.f32 0.0, %v934
      %v936 = vpop.f32.mrb[0].mxu0
      %937 = vmatprep.mubr.f32.mxu0 0.0
      %938 = vmatmul.mubr.f32.gmra.mrb[0].mxu0 %v762
      %v939 = vpop.f32.mrb[0].mxu0
      %v940 = vadd.f32 0.0, %v939
      %v941 = vpop.f32.mrb[0].mxu0
      %942 = vmatprep.mubr.f32.mxu0 0.0
      %943 = vmatmul.mubr.f32.gmra.mrb[0].mxu0 %v765
      %v944 = vpop.f32.mrb[0].mxu0
      %v945 = vadd.f32 0.0, %v944
      %v946 = vpop.f32.mrb[0].mxu0
      %947 = vmatprep.mubr.f32.mxu0 0.0
      %948 = vmatmul.mubr.f32.gmra.mrb[0].mxu0 %v768
      %v949 = vpop.f32.mrb[0].mxu0
      %v950 = vadd.f32 0.0, %v949
      %v951 = vpop.f32.mrb[0].mxu0
      %952 = vmatprep.mubr.f32.mxu0 0.0
      %953 = vmatmul.mubr.f32.gmra.mrb[0].mxu0 %v771
      %v954 = vpop.f32.mrb[0].mxu0
      %v955 = vadd.f32 0.0, %v954
      %v956 = vpop.f32.mrb[0].mxu0
      %957 = vmatprep.mubr.f32.mxu0 0.0
      %958 = vmatmul.mubr.f32.gmra.mrb[0].mxu0 %v774
      %v959 = vpop.f32.mrb[0].mxu0
      %v960 = vadd.f32 0.0, %v959
      %v961 = vpop.f32.mrb[0].mxu0
      %962 = vmatprep.mubr.f32.mxu0 0.0
      %963 = vmatmul.mubr.f32.gmra.mrb[0].mxu0 %v777
      %v964 = vpop.f32.mrb[0].mxu0
      %v965 = vadd.f32 0.0, %v964
      %v966 = vpop.f32.mrb[0].mxu0
      %967 = vmatprep.mubr.f32.mxu0 0.0
      %968 = vmatmul.mubr.f32.gmra.mrb[0].mxu0 %v780
      %v969 = vpop.f32.mrb[0].mxu0
      %v970 = vadd.f32 0.0, %v969
      %v971 = vpop.f32.mrb[0].mxu0
      %972 = vmatprep.mubr.f32.mxu0 0.0
      %973 = vmatmul.mubr.f32.gmra.mrb[0].mxu0 %v783
      %v974 = vpop.f32.mrb[0].mxu0
      %v975 = vadd.f32 0.0, %v974
      %v976 = vpop.f32.mrb[0].mxu0
      %977 = vmatprep.mubr.f32.mxu0 0.0
      %978 = vmatmul.mubr.f32.gmra.mrb[0].mxu0 %v786
      %v979 = vpop.f32.mrb[0].mxu0
      %v980 = vadd.f32 0.0, %v979
      %v981 = vpop.f32.mrb[0].mxu0
      %982 = vmatprep.mubr.f32.mxu0 0.0
      %983 = vmatmul.mubr.f32.gmra.mrb[0].mxu0 %v789
      %v984 = vpop.f32.mrb[0].mxu0
      %v985 = vadd.f32 0.0, %v984
      %v986 = vpop.f32.mrb[0].mxu0
      %987 = vmatprep.mubr.f32.mxu0 0.0
      %988 = vmatmul.mubr.f32.gmra.mrb[0].mxu0 %v792
      %v989 = vpop.f32.mrb[0].mxu0
      %v990 = vadd.f32 0.0, %v989
      %v991 = vpop.f32.mrb[0].mxu0
      %992 = vmatprep.mubr.f32.mxu0 0.0
      %993 = vmatmul.mubr.f32.gmra.mrb[0].mxu0 %v795
      %v994 = vpop.f32.mrb[0].mxu0
      %v995 = vadd.f32 0.0, %v994
      %v996 = vpop.f32.mrb[0].mxu0
      %997 = vmatprep.mubr.f32.mxu0 0.0
      %998 = vmatmul.mubr.f32.gmra.mrb[0].mxu0 %v798
      %v999 = vpop.f32.mrb[0].mxu0
      %v1000 = vadd.f32 0.0, %v999
      %v1001 = vpop.f32.mrb[0].mxu0
      %1002 = vmatprep.mubr.f32.mxu0 0.0
      %1003 = vmatmul.mubr.f32.gmra.mrb[0].mxu0 %v801
      %v1004 = vpop.f32.mrb[0].mxu0
      %v1005 = vadd.f32 0.0, %v1004
      %v1006 = vpop.f32.mrb[0].mxu0
      %1007 = vmatprep.mubr.f32.mxu0 0.0
      %1008 = vmatmul.mubr.f32.gmra.mrb[0].mxu0 %v804
      %v1009 = vpop.f32.mrb[0].mxu0
      %v1010 = vadd.f32 0.0, %v1009
      %v1011 = vpop.f32.mrb[0].mxu0
      %1012 = vmatprep.mubr.f32.mxu0 0.0
      %1013 = vmatmul.mubr.f32.gmra.mrb[0].mxu0 %v807
      %v1014 = vpop.f32.mrb[0].mxu0
      %v1015 = vadd.f32 0.0, %v1014
      %v1016 = vpop.f32.mrb[0].mxu0
      %1017 = vmatprep.mubr.f32.mxu0 0.0
      %1018 = vmatmul.mubr.f32.gmra.mrb[0].mxu0 %v810
      %v1019 = vpop.f32.mrb[0].mxu0
      %v1020 = vadd.f32 0.0, %v1019
      %v1021 = vpop.f32.mrb[0].mxu0
      %1022 = vmatprep.mubr.f32.mxu0 0.0
      %1023 = vmatmul.mubr.f32.gmra.mrb[0].mxu0 %v813
      %v1024 = vpop.f32.mrb[0].mxu0
      %v1025 = vadd.f32 0.0, %v1024
      %v1026 = vpop.f32.mrb[0].mxu0
      %1027 = vmatprep.mubr.f32.mxu0 0.0
      %1028 = vmatmul.mubr.f32.gmra.mrb[0].mxu0 %v816
      %v1029 = vpop.f32.mrb[0].mxu0
      %v1030 = vadd.f32 0.0, %v1029
      %v1031 = vpop.f32.mrb[0].mxu0
      %1032 = vmatprep.mubr.f32.mxu0 0.0
      %1033 = vmatmul.mubr.f32.gmra.mrb[0].mxu0 %v819
      %v1034 = vpop.f32.mrb[0].mxu0
      %v1035 = vadd.f32 0.0, %v1034
      %v1036 = vpop.f32.mrb[0].mxu0
      %1037 = vmatprep.mubr.f32.mxu0 0.0
      %1038 = vmatmul.mubr.f32.gmra.mrb[0].mxu0 %v822
      %v1039 = vpop.f32.mrb[0].mxu0
      %v1040 = vadd.f32 0.0, %v1039
      %v1041 = vpop.f32.mrb[0].mxu0
      %1042 = vmatprep.mubr.f32.mxu0 0.0
      %1043 = vmatmul.mubr.f32.gmra.mrb[0].mxu0 %v825
      %v1044 = vpop.f32.mrb[0].mxu0
      %v1045 = vadd.f32 0.0, %v1044
      %v1046 = vpop.f32.mrb[0].mxu0
      %1047 = vmatprep.mubr.f32.mxu0 0.0
      %1048 = vmatmul.mubr.f32.gmra.mrb[0].mxu0 %v828
      %v1049 = vpop.f32.mrb[0].mxu0
      %v1050 = vadd.f32 0.0, %v1049
      %v1051 = vpop.f32.mrb[0].mxu0
      %1052 = vmatprep.mubr.f32.mxu0 0.0
      %1053 = vmatmul.mubr.f32.gmra.mrb[0].mxu0 %v831
      %v1054 = vpop.f32.mrb[0].mxu0
      %v1055 = vadd.f32 0.0, %v1054
      %v1056 = vpop.f32.mrb[0].mxu0
      %1057 = vdwg.mxu0
      %v1058 = vadd.f32 %v669, %v900
      %v1059 = vadd.f32 %v670, %v905
      %v1060 = vadd.f32 %v671, %v910
      %v1061 = vadd.f32 %v672, %v915
      %v1062 = vadd.f32 %v673, %v920
      %v1063 = vadd.f32 %v674, %v925
      %v1064 = vadd.f32 %v675, %v930
      %v1065 = vadd.f32 %v676, %v935
      %v1066 = vadd.f32 %v677, %v940
      %v1067 = vadd.f32 %v678, %v945
      %v1068 = vadd.f32 %v679, %v950
      %v1069 = vadd.f32 %v680, %v955
      %v1070 = vadd.f32 %v681, %v960
      %v1071 = vadd.f32 %v682, %v965
      %v1072 = vadd.f32 %v683, %v970
      %v1073 = vadd.f32 %v684, %v975
      %v1074 = vadd.f32 %v685, %v980
      %v1075 = vadd.f32 %v686, %v985
      %v1076 = vadd.f32 %v687, %v990
      %v1077 = vadd.f32 %v688, %v995
      %v1078 = vadd.f32 %v689, %v1000
      %v1079 = vadd.f32 %v690, %v1005
      %v1080 = vadd.f32 %v691, %v1010
      %v1081 = vadd.f32 %v692, %v1015
      %v1082 = vadd.f32 %v693, %v1020
      %v1083 = vadd.f32 %v694, %v1025
      %v1084 = vadd.f32 %v695, %v1030
      %v1085 = vadd.f32 %v696, %v1035
      %v1086 = vadd.f32 %v697, %v1040
      %v1087 = vadd.f32 %v698, %v1045
      %v1088 = vadd.f32 %v699, %v1050
      %v1089 = vadd.f32 %v700, %v1055
      %v1090 = vld [vmem:[%s5] sm:$0xff]
      %v1091 = vld [vmem:[%s5 + $0x8] sm:$0xff]
      %v1092 = vld [vmem:[%s5 + $0x10] sm:$0xff]
      %v1093 = vld [vmem:[%s5 + $0x18] sm:$0xff]
      %v1094 = vld [vmem:[%s5 + $0x20] sm:$0xff]
      %v1095 = vld [vmem:[%s5 + $0x28] sm:$0xff]
      %v1096 = vld [vmem:[%s5 + $0x30] sm:$0xff]
      %v1097 = vld [vmem:[%s5 + $0x38] sm:$0xff]
      %v1098 = vld [vmem:[%s5 + $0x40] sm:$0xff]
      %v1099 = vld [vmem:[%s5 + $0x48] sm:$0xff]
      %v1100 = vld [vmem:[%s5 + $0x50] sm:$0xff]
      %v1101 = vld [vmem:[%s5 + $0x58] sm:$0xff]
      %v1102 = vld [vmem:[%s5 + $0x60] sm:$0xff]
      %v1103 = vld [vmem:[%s5 + $0x68] sm:$0xff]
      %v1104 = vld [vmem:[%s5 + $0x70] sm:$0xff]
      %v1105 = vld [vmem:[%s5 + $0x78] sm:$0xff]
      %1106 = vmatprep.subr.mxu0 0.0
      %1107 = vmatpush1.msra.mxu0 %v1090
      %1108 = vmatprep.subr.mxu0 0.0
      %1109 = vmatpush1.msra.mxu0 %v1091
      %1110 = vmatprep.subr.mxu0 0.0
      %1111 = vmatpush1.msra.mxu0 %v1092
      %1112 = vmatprep.subr.mxu0 0.0
      %1113 = vmatpush1.msra.mxu0 %v1093
      %1114 = vmatprep.subr.mxu0 0.0
      %1115 = vmatpush1.msra.mxu0 %v1094
      %1116 = vmatprep.subr.mxu0 0.0
      %1117 = vmatpush1.msra.mxu0 %v1095
      %1118 = vmatprep.subr.mxu0 0.0
      %1119 = vmatpush1.msra.mxu0 %v1096
      %1120 = vmatprep.subr.mxu0 0.0
      %1121 = vmatpush1.msra.mxu0 %v1097
      %1122 = vmatprep.subr.mxu0 0.0
      %1123 = vmatpush1.msra.mxu0 %v1098
      %1124 = vmatprep.subr.mxu0 0.0
      %1125 = vmatpush1.msra.mxu0 %v1099
      %1126 = vmatprep.subr.mxu0 0.0
      %1127 = vmatpush1.msra.mxu0 %v1100
      %1128 = vmatprep.subr.mxu0 0.0
      %1129 = vmatpush1.msra.mxu0 %v1101
      %1130 = vmatprep.subr.mxu0 0.0
      %1131 = vmatpush1.msra.mxu0 %v1102
      %1132 = vmatprep.subr.mxu0 0.0
      %1133 = vmatpush1.msra.mxu0 %v1103
      %1134 = vmatprep.subr.mxu0 0.0
      %1135 = vmatpush1.msra.mxu0 %v1104
      %1136 = vmatprep.subr.mxu0 0.0
      %1137 = vmatpush1.msra.mxu0 %v1105
      %1138 = vmatprep.subr.mxu0 0.0
      %1139 = vmatpush1.msra.mxu0 0.0
      %1140 = vmatprep.subr.mxu0 0.0
      %1141 = vmatpush1.msra.mxu0 0.0
      %1142 = vmatprep.subr.mxu0 0.0
      %1143 = vmatpush1.msra.mxu0 0.0
      %1144 = vmatprep.subr.mxu0 0.0
      %1145 = vmatpush1.msra.mxu0 0.0
      %1146 = vmatprep.subr.mxu0 0.0
      %1147 = vmatpush1.msra.mxu0 0.0
      %1148 = vmatprep.subr.mxu0 0.0
      %1149 = vmatpush1.msra.mxu0 0.0
      %1150 = vmatprep.subr.mxu0 0.0
      %1151 = vmatpush1.msra.mxu0 0.0
      %1152 = vmatprep.subr.mxu0 0.0
      %1153 = vmatpush1.msra.mxu0 0.0
      %1154 = vmatprep.subr.mxu0 0.0
      %1155 = vmatpush1.msra.mxu0 0.0
      %1156 = vmatprep.subr.mxu0 0.0
      %1157 = vmatpush1.msra.mxu0 0.0
      %1158 = vmatprep.subr.mxu0 0.0
      %1159 = vmatpush1.msra.mxu0 0.0
      %1160 = vmatprep.subr.mxu0 0.0
      %1161 = vmatpush1.msra.mxu0 0.0
      %1162 = vmatprep.subr.mxu0 0.0
      %1163 = vmatpush1.msra.mxu0 0.0
      %1164 = vmatprep.subr.mxu0 0.0
      %1165 = vmatpush1.msra.mxu0 0.0
      %1166 = vmatprep.subr.mxu0 0.0
      %1167 = vmatpush1.msra.mxu0 0.0
      %1168 = vmatprep.subr.mxu0 0.0
      %1169 = vmatpush1.msra.mxu0 0.0
      %1170 = vmatprep.mubr.f32.mxu0 0.0
      %1171 = vmatmul.mubr.f32.gmra.mrb[0].mxu0 %v1058
      %v1172 = vpop.f32.mrb[0].mxu0
      %v1173 = vadd.f32 0.0, %v1172
      %v1174 = vpop.f32.mrb[0].mxu0
      %1175 = vmatprep.mubr.f32.mxu0 0.0
      %1176 = vmatmul.mubr.f32.gmra.mrb[0].mxu0 %v1059
      %v1177 = vpop.f32.mrb[0].mxu0
      %v1178 = vadd.f32 0.0, %v1177
      %v1179 = vpop.f32.mrb[0].mxu0
      %1180 = vmatprep.mubr.f32.mxu0 0.0
      %1181 = vmatmul.mubr.f32.gmra.mrb[0].mxu0 %v1060
      %v1182 = vpop.f32.mrb[0].mxu0
      %v1183 = vadd.f32 0.0, %v1182
      %v1184 = vpop.f32.mrb[0].mxu0
      %1185 = vmatprep.mubr.f32.mxu0 0.0
      %1186 = vmatmul.mubr.f32.gmra.mrb[0].mxu0 %v1061
      %v1187 = vpop.f32.mrb[0].mxu0
      %v1188 = vadd.f32 0.0, %v1187
      %v1189 = vpop.f32.mrb[0].mxu0
      %1190 = vmatprep.mubr.f32.mxu0 0.0
      %1191 = vmatmul.mubr.f32.gmra.mrb[0].mxu0 %v1062
      %v1192 = vpop.f32.mrb[0].mxu0
      %v1193 = vadd.f32 0.0, %v1192
      %v1194 = vpop.f32.mrb[0].mxu0
      %1195 = vmatprep.mubr.f32.mxu0 0.0
      %1196 = vmatmul.mubr.f32.gmra.mrb[0].mxu0 %v1063
      %v1197 = vpop.f32.mrb[0].mxu0
      %v1198 = vadd.f32 0.0, %v1197
      %v1199 = vpop.f32.mrb[0].mxu0
      %1200 = vmatprep.mubr.f32.mxu0 0.0
      %1201 = vmatmul.mubr.f32.gmra.mrb[0].mxu0 %v1064
      %v1202 = vpop.f32.mrb[0].mxu0
      %v1203 = vadd.f32 0.0, %v1202
      %v1204 = vpop.f32.mrb[0].mxu0
      %1205 = vmatprep.mubr.f32.mxu0 0.0
      %1206 = vmatmul.mubr.f32.gmra.mrb[0].mxu0 %v1065
      %v1207 = vpop.f32.mrb[0].mxu0
      %v1208 = vadd.f32 0.0, %v1207
      %v1209 = vpop.f32.mrb[0].mxu0
      %1210 = vmatprep.mubr.f32.mxu0 0.0
      %1211 = vmatmul.mubr.f32.gmra.mrb[0].mxu0 %v1066
      %v1212 = vpop.f32.mrb[0].mxu0
      %v1213 = vadd.f32 0.0, %v1212
      %v1214 = vpop.f32.mrb[0].mxu0
      %1215 = vmatprep.mubr.f32.mxu0 0.0
      %1216 = vmatmul.mubr.f32.gmra.mrb[0].mxu0 %v1067
      %v1217 = vpop.f32.mrb[0].mxu0
      %v1218 = vadd.f32 0.0, %v1217
      %v1219 = vpop.f32.mrb[0].mxu0
      %1220 = vmatprep.mubr.f32.mxu0 0.0
      %1221 = vmatmul.mubr.f32.gmra.mrb[0].mxu0 %v1068
      %v1222 = vpop.f32.mrb[0].mxu0
      %v1223 = vadd.f32 0.0, %v1222
      %v1224 = vpop.f32.mrb[0].mxu0
      %1225 = vmatprep.mubr.f32.mxu0 0.0
      %1226 = vmatmul.mubr.f32.gmra.mrb[0].mxu0 %v1069
      %v1227 = vpop.f32.mrb[0].mxu0
      %v1228 = vadd.f32 0.0, %v1227
      %v1229 = vpop.f32.mrb[0].mxu0
      %1230 = vmatprep.mubr.f32.mxu0 0.0
      %1231 = vmatmul.mubr.f32.gmra.mrb[0].mxu0 %v1070
      %v1232 = vpop.f32.mrb[0].mxu0
      %v1233 = vadd.f32 0.0, %v1232
      %v1234 = vpop.f32.mrb[0].mxu0
      %1235 = vmatprep.mubr.f32.mxu0 0.0
      %1236 = vmatmul.mubr.f32.gmra.mrb[0].mxu0 %v1071
      %v1237 = vpop.f32.mrb[0].mxu0
      %v1238 = vadd.f32 0.0, %v1237
      %v1239 = vpop.f32.mrb[0].mxu0
      %1240 = vmatprep.mubr.f32.mxu0 0.0
      %1241 = vmatmul.mubr.f32.gmra.mrb[0].mxu0 %v1072
      %v1242 = vpop.f32.mrb[0].mxu0
      %v1243 = vadd.f32 0.0, %v1242
      %v1244 = vpop.f32.mrb[0].mxu0
      %1245 = vmatprep.mubr.f32.mxu0 0.0
      %1246 = vmatmul.mubr.f32.gmra.mrb[0].mxu0 %v1073
      %v1247 = vpop.f32.mrb[0].mxu0
      %v1248 = vadd.f32 0.0, %v1247
      %v1249 = vpop.f32.mrb[0].mxu0
      %1250 = vmatprep.mubr.f32.mxu0 0.0
      %1251 = vmatmul.mubr.f32.gmra.mrb[0].mxu0 %v1074
      %v1252 = vpop.f32.mrb[0].mxu0
      %v1253 = vadd.f32 0.0, %v1252
      %v1254 = vpop.f32.mrb[0].mxu0
      %1255 = vmatprep.mubr.f32.mxu0 0.0
      %1256 = vmatmul.mubr.f32.gmra.mrb[0].mxu0 %v1075
      %v1257 = vpop.f32.mrb[0].mxu0
      %v1258 = vadd.f32 0.0, %v1257
      %v1259 = vpop.f32.mrb[0].mxu0
      %1260 = vmatprep.mubr.f32.mxu0 0.0
      %1261 = vmatmul.mubr.f32.gmra.mrb[0].mxu0 %v1076
      %v1262 = vpop.f32.mrb[0].mxu0
      %v1263 = vadd.f32 0.0, %v1262
      %v1264 = vpop.f32.mrb[0].mxu0
      %1265 = vmatprep.mubr.f32.mxu0 0.0
      %1266 = vmatmul.mubr.f32.gmra.mrb[0].mxu0 %v1077
      %v1267 = vpop.f32.mrb[0].mxu0
      %v1268 = vadd.f32 0.0, %v1267
      %v1269 = vpop.f32.mrb[0].mxu0
      %1270 = vmatprep.mubr.f32.mxu0 0.0
      %1271 = vmatmul.mubr.f32.gmra.mrb[0].mxu0 %v1078
      %v1272 = vpop.f32.mrb[0].mxu0
      %v1273 = vadd.f32 0.0, %v1272
      %v1274 = vpop.f32.mrb[0].mxu0
      %1275 = vmatprep.mubr.f32.mxu0 0.0
      %1276 = vmatmul.mubr.f32.gmra.mrb[0].mxu0 %v1079
      %v1277 = vpop.f32.mrb[0].mxu0
      %v1278 = vadd.f32 0.0, %v1277
      %v1279 = vpop.f32.mrb[0].mxu0
      %1280 = vmatprep.mubr.f32.mxu0 0.0
      %1281 = vmatmul.mubr.f32.gmra.mrb[0].mxu0 %v1080
      %v1282 = vpop.f32.mrb[0].mxu0
      %v1283 = vadd.f32 0.0, %v1282
      %v1284 = vpop.f32.mrb[0].mxu0
      %1285 = vmatprep.mubr.f32.mxu0 0.0
      %1286 = vmatmul.mubr.f32.gmra.mrb[0].mxu0 %v1081
      %v1287 = vpop.f32.mrb[0].mxu0
      %v1288 = vadd.f32 0.0, %v1287
      %v1289 = vpop.f32.mrb[0].mxu0
      %1290 = vmatprep.mubr.f32.mxu0 0.0
      %1291 = vmatmul.mubr.f32.gmra.mrb[0].mxu0 %v1082
      %v1292 = vpop.f32.mrb[0].mxu0
      %v1293 = vadd.f32 0.0, %v1292
      %v1294 = vpop.f32.mrb[0].mxu0
      %1295 = vmatprep.mubr.f32.mxu0 0.0
      %1296 = vmatmul.mubr.f32.gmra.mrb[0].mxu0 %v1083
      %v1297 = vpop.f32.mrb[0].mxu0
      %v1298 = vadd.f32 0.0, %v1297
      %v1299 = vpop.f32.mrb[0].mxu0
      %1300 = vmatprep.mubr.f32.mxu0 0.0
      %1301 = vmatmul.mubr.f32.gmra.mrb[0].mxu0 %v1084
      %v1302 = vpop.f32.mrb[0].mxu0
      %v1303 = vadd.f32 0.0, %v1302
      %v1304 = vpop.f32.mrb[0].mxu0
      %1305 = vmatprep.mubr.f32.mxu0 0.0
      %1306 = vmatmul.mubr.f32.gmra.mrb[0].mxu0 %v1085
      %v1307 = vpop.f32.mrb[0].mxu0
      %v1308 = vadd.f32 0.0, %v1307
      %v1309 = vpop.f32.mrb[0].mxu0
      %1310 = vmatprep.mubr.f32.mxu0 0.0
      %1311 = vmatmul.mubr.f32.gmra.mrb[0].mxu0 %v1086
      %v1312 = vpop.f32.mrb[0].mxu0
      %v1313 = vadd.f32 0.0, %v1312
      %v1314 = vpop.f32.mrb[0].mxu0
      %1315 = vmatprep.mubr.f32.mxu0 0.0
      %1316 = vmatmul.mubr.f32.gmra.mrb[0].mxu0 %v1087
      %v1317 = vpop.f32.mrb[0].mxu0
      %v1318 = vadd.f32 0.0, %v1317
      %v1319 = vpop.f32.mrb[0].mxu0
      %1320 = vmatprep.mubr.f32.mxu0 0.0
      %1321 = vmatmul.mubr.f32.gmra.mrb[0].mxu0 %v1088
      %v1322 = vpop.f32.mrb[0].mxu0
      %v1323 = vadd.f32 0.0, %v1322
      %v1324 = vpop.f32.mrb[0].mxu0
      %1325 = vmatprep.mubr.f32.mxu0 0.0
      %1326 = vmatmul.mubr.f32.gmra.mrb[0].mxu0 %v1089
      %v1327 = vpop.f32.mrb[0].mxu0
      %v1328 = vadd.f32 0.0, %v1327
      %v1329 = vpop.f32.mrb[0].mxu0
      %1330 = vdwg.mxu0
      %v1331 = vmax.f32 %v1173, 0.0
      %v1332 = vmax.f32 %v1178, 0.0
      %v1333 = vmax.f32 %v1183, 0.0
      %v1334 = vmax.f32 %v1188, 0.0
      %v1335 = vmax.f32 %v1193, 0.0
      %v1336 = vmax.f32 %v1198, 0.0
      %v1337 = vmax.f32 %v1203, 0.0
      %v1338 = vmax.f32 %v1208, 0.0
      %v1339 = vmax.f32 %v1213, 0.0
      %v1340 = vmax.f32 %v1218, 0.0
      %v1341 = vmax.f32 %v1223, 0.0
      %v1342 = vmax.f32 %v1228, 0.0
      %v1343 = vmax.f32 %v1233, 0.0
      %v1344 = vmax.f32 %v1238, 0.0
      %v1345 = vmax.f32 %v1243, 0.0
      %v1346 = vmax.f32 %v1248, 0.0
      %v1347 = vmax.f32 %v1253, 0.0
      %v1348 = vmax.f32 %v1258, 0.0
      %v1349 = vmax.f32 %v1263, 0.0
      %v1350 = vmax.f32 %v1268, 0.0
      %v1351 = vmax.f32 %v1273, 0.0
      %v1352 = vmax.f32 %v1278, 0.0
      %v1353 = vmax.f32 %v1283, 0.0
      %v1354 = vmax.f32 %v1288, 0.0
      %v1355 = vmax.f32 %v1293, 0.0
      %v1356 = vmax.f32 %v1298, 0.0
      %v1357 = vmax.f32 %v1303, 0.0
      %v1358 = vmax.f32 %v1308, 0.0
      %v1359 = vmax.f32 %v1313, 0.0
      %v1360 = vmax.f32 %v1318, 0.0
      %v1361 = vmax.f32 %v1323, 0.0
      %v1362 = vmax.f32 %v1328, 0.0
      %v1363 = vld [vmem:[%s6] sm:$0xff]
      %v1364 = vld [vmem:[%s6 + $0x8] sm:$0xff]
      %v1365 = vld [vmem:[%s6 + $0x10] sm:$0xff]
      %v1366 = vld [vmem:[%s6 + $0x18] sm:$0xff]
      %v1367 = vld [vmem:[%s6 + $0x20] sm:$0xff]
      %v1368 = vld [vmem:[%s6 + $0x28] sm:$0xff]
      %v1369 = vld [vmem:[%s6 + $0x30] sm:$0xff]
      %v1370 = vld [vmem:[%s6 + $0x38] sm:$0xff]
      %v1371 = vld [vmem:[%s6 + $0x40] sm:$0xff]
      %v1372 = vld [vmem:[%s6 + $0x48] sm:$0xff]
      %v1373 = vld [vmem:[%s6 + $0x50] sm:$0xff]
      %v1374 = vld [vmem:[%s6 + $0x58] sm:$0xff]
      %v1375 = vld [vmem:[%s6 + $0x60] sm:$0xff]
      %v1376 = vld [vmem:[%s6 + $0x68] sm:$0xff]
      %v1377 = vld [vmem:[%s6 + $0x70] sm:$0xff]
      %v1378 = vld [vmem:[%s6 + $0x78] sm:$0xff]
      %1379 = vmatprep.subr.mxu0 0.0
      %1380 = vmatpush1.msra.mxu0 %v1363
      %1381 = vmatprep.subr.mxu0 0.0
      %1382 = vmatpush1.msra.mxu0 %v1364
      %1383 = vmatprep.subr.mxu0 0.0
      %1384 = vmatpush1.msra.mxu0 %v1365
      %1385 = vmatprep.subr.mxu0 0.0
      %1386 = vmatpush1.msra.mxu0 %v1366
      %1387 = vmatprep.subr.mxu0 0.0
      %1388 = vmatpush1.msra.mxu0 %v1367
      %1389 = vmatprep.subr.mxu0 0.0
      %1390 = vmatpush1.msra.mxu0 %v1368
      %1391 = vmatprep.subr.mxu0 0.0
      %1392 = vmatpush1.msra.mxu0 %v1369
      %1393 = vmatprep.subr.mxu0 0.0
      %1394 = vmatpush1.msra.mxu0 %v1370
      %1395 = vmatprep.subr.mxu0 0.0
      %1396 = vmatpush1.msra.mxu0 %v1371
      %1397 = vmatprep.subr.mxu0 0.0
      %1398 = vmatpush1.msra.mxu0 %v1372
      %1399 = vmatprep.subr.mxu0 0.0
      %1400 = vmatpush1.msra.mxu0 %v1373
      %1401 = vmatprep.subr.mxu0 0.0
      %1402 = vmatpush1.msra.mxu0 %v1374
      %1403 = vmatprep.subr.mxu0 0.0
      %1404 = vmatpush1.msra.mxu0 %v1375
      %1405 = vmatprep.subr.mxu0 0.0
      %1406 = vmatpush1.msra.mxu0 %v1376
      %1407 = vmatprep.subr.mxu0 0.0
      %1408 = vmatpush1.msra.mxu0 %v1377
      %1409 = vmatprep.subr.mxu0 0.0
      %1410 = vmatpush1.msra.mxu0 %v1378
      %1411 = vmatprep.subr.mxu0 0.0
      %1412 = vmatpush1.msra.mxu0 0.0
      %1413 = vmatprep.subr.mxu0 0.0
      %1414 = vmatpush1.msra.mxu0 0.0
      %1415 = vmatprep.subr.mxu0 0.0
      %1416 = vmatpush1.msra.mxu0 0.0
      %1417 = vmatprep.subr.mxu0 0.0
      %1418 = vmatpush1.msra.mxu0 0.0
      %1419 = vmatprep.subr.mxu0 0.0
      %1420 = vmatpush1.msra.mxu0 0.0
      %1421 = vmatprep.subr.mxu0 0.0
      %1422 = vmatpush1.msra.mxu0 0.0
      %1423 = vmatprep.subr.mxu0 0.0
      %1424 = vmatpush1.msra.mxu0 0.0
      %1425 = vmatprep.subr.mxu0 0.0
      %1426 = vmatpush1.msra.mxu0 0.0
      %1427 = vmatprep.subr.mxu0 0.0
      %1428 = vmatpush1.msra.mxu0 0.0
      %1429 = vmatprep.subr.mxu0 0.0
      %1430 = vmatpush1.msra.mxu0 0.0
      %1431 = vmatprep.subr.mxu0 0.0
      %1432 = vmatpush1.msra.mxu0 0.0
      %1433 = vmatprep.subr.mxu0 0.0
      %1434 = vmatpush1.msra.mxu0 0.0
      %1435 = vmatprep.subr.mxu0 0.0
      %1436 = vmatpush1.msra.mxu0 0.0
      %1437 = vmatprep.subr.mxu0 0.0
      %1438 = vmatpush1.msra.mxu0 0.0
      %1439 = vmatprep.subr.mxu0 0.0
      %1440 = vmatpush1.msra.mxu0 0.0
      %1441 = vmatprep.subr.mxu0 0.0
      %1442 = vmatpush1.msra.mxu0 0.0
      %1443 = vmatprep.mubr.f32.mxu0 0.0
      %1444 = vmatmul.mubr.f32.gmra.mrb[0].mxu0 %v1331
      %v1445 = vpop.f32.mrb[0].mxu0
      %v1446 = vadd.f32 0.0, %v1445
      %v1447 = vpop.f32.mrb[0].mxu0
      %1448 = vmatprep.mubr.f32.mxu0 0.0
      %1449 = vmatmul.mubr.f32.gmra.mrb[0].mxu0 %v1332
      %v1450 = vpop.f32.mrb[0].mxu0
      %v1451 = vadd.f32 0.0, %v1450
      %v1452 = vpop.f32.mrb[0].mxu0
      %1453 = vmatprep.mubr.f32.mxu0 0.0
      %1454 = vmatmul.mubr.f32.gmra.mrb[0].mxu0 %v1333
      %v1455 = vpop.f32.mrb[0].mxu0
      %v1456 = vadd.f32 0.0, %v1455
      %v1457 = vpop.f32.mrb[0].mxu0
      %1458 = vmatprep.mubr.f32.mxu0 0.0
      %1459 = vmatmul.mubr.f32.gmra.mrb[0].mxu0 %v1334
      %v1460 = vpop.f32.mrb[0].mxu0
      %v1461 = vadd.f32 0.0, %v1460
      %v1462 = vpop.f32.mrb[0].mxu0
      %1463 = vmatprep.mubr.f32.mxu0 0.0
      %1464 = vmatmul.mubr.f32.gmra.mrb[0].mxu0 %v1335
      %v1465 = vpop.f32.mrb[0].mxu0
      %v1466 = vadd.f32 0.0, %v1465
      %v1467 = vpop.f32.mrb[0].mxu0
      %1468 = vmatprep.mubr.f32.mxu0 0.0
      %1469 = vmatmul.mubr.f32.gmra.mrb[0].mxu0 %v1336
      %v1470 = vpop.f32.mrb[0].mxu0
      %v1471 = vadd.f32 0.0, %v1470
      %v1472 = vpop.f32.mrb[0].mxu0
      %1473 = vmatprep.mubr.f32.mxu0 0.0
      %1474 = vmatmul.mubr.f32.gmra.mrb[0].mxu0 %v1337
      %v1475 = vpop.f32.mrb[0].mxu0
      %v1476 = vadd.f32 0.0, %v1475
      %v1477 = vpop.f32.mrb[0].mxu0
      %1478 = vmatprep.mubr.f32.mxu0 0.0
      %1479 = vmatmul.mubr.f32.gmra.mrb[0].mxu0 %v1338
      %v1480 = vpop.f32.mrb[0].mxu0
      %v1481 = vadd.f32 0.0, %v1480
      %v1482 = vpop.f32.mrb[0].mxu0
      %1483 = vmatprep.mubr.f32.mxu0 0.0
      %1484 = vmatmul.mubr.f32.gmra.mrb[0].mxu0 %v1339
      %v1485 = vpop.f32.mrb[0].mxu0
      %v1486 = vadd.f32 0.0, %v1485
      %v1487 = vpop.f32.mrb[0].mxu0
      %1488 = vmatprep.mubr.f32.mxu0 0.0
      %1489 = vmatmul.mubr.f32.gmra.mrb[0].mxu0 %v1340
      %v1490 = vpop.f32.mrb[0].mxu0
      %v1491 = vadd.f32 0.0, %v1490
      %v1492 = vpop.f32.mrb[0].mxu0
      %1493 = vmatprep.mubr.f32.mxu0 0.0
      %1494 = vmatmul.mubr.f32.gmra.mrb[0].mxu0 %v1341
      %v1495 = vpop.f32.mrb[0].mxu0
      %v1496 = vadd.f32 0.0, %v1495
      %v1497 = vpop.f32.mrb[0].mxu0
      %1498 = vmatprep.mubr.f32.mxu0 0.0
      %1499 = vmatmul.mubr.f32.gmra.mrb[0].mxu0 %v1342
      %v1500 = vpop.f32.mrb[0].mxu0
      %v1501 = vadd.f32 0.0, %v1500
      %v1502 = vpop.f32.mrb[0].mxu0
      %1503 = vmatprep.mubr.f32.mxu0 0.0
      %1504 = vmatmul.mubr.f32.gmra.mrb[0].mxu0 %v1343
      %v1505 = vpop.f32.mrb[0].mxu0
      %v1506 = vadd.f32 0.0, %v1505
      %v1507 = vpop.f32.mrb[0].mxu0
      %1508 = vmatprep.mubr.f32.mxu0 0.0
      %1509 = vmatmul.mubr.f32.gmra.mrb[0].mxu0 %v1344
      %v1510 = vpop.f32.mrb[0].mxu0
      %v1511 = vadd.f32 0.0, %v1510
      %v1512 = vpop.f32.mrb[0].mxu0
      %1513 = vmatprep.mubr.f32.mxu0 0.0
      %1514 = vmatmul.mubr.f32.gmra.mrb[0].mxu0 %v1345
      %v1515 = vpop.f32.mrb[0].mxu0
      %v1516 = vadd.f32 0.0, %v1515
      %v1517 = vpop.f32.mrb[0].mxu0
      %1518 = vmatprep.mubr.f32.mxu0 0.0
      %1519 = vmatmul.mubr.f32.gmra.mrb[0].mxu0 %v1346
      %v1520 = vpop.f32.mrb[0].mxu0
      %v1521 = vadd.f32 0.0, %v1520
      %v1522 = vpop.f32.mrb[0].mxu0
      %1523 = vmatprep.mubr.f32.mxu0 0.0
      %1524 = vmatmul.mubr.f32.gmra.mrb[0].mxu0 %v1347
      %v1525 = vpop.f32.mrb[0].mxu0
      %v1526 = vadd.f32 0.0, %v1525
      %v1527 = vpop.f32.mrb[0].mxu0
      %1528 = vmatprep.mubr.f32.mxu0 0.0
      %1529 = vmatmul.mubr.f32.gmra.mrb[0].mxu0 %v1348
      %v1530 = vpop.f32.mrb[0].mxu0
      %v1531 = vadd.f32 0.0, %v1530
      %v1532 = vpop.f32.mrb[0].mxu0
      %1533 = vmatprep.mubr.f32.mxu0 0.0
      %1534 = vmatmul.mubr.f32.gmra.mrb[0].mxu0 %v1349
      %v1535 = vpop.f32.mrb[0].mxu0
      %v1536 = vadd.f32 0.0, %v1535
      %v1537 = vpop.f32.mrb[0].mxu0
      %1538 = vmatprep.mubr.f32.mxu0 0.0
      %1539 = vmatmul.mubr.f32.gmra.mrb[0].mxu0 %v1350
      %v1540 = vpop.f32.mrb[0].mxu0
      %v1541 = vadd.f32 0.0, %v1540
      %v1542 = vpop.f32.mrb[0].mxu0
      %1543 = vmatprep.mubr.f32.mxu0 0.0
      %1544 = vmatmul.mubr.f32.gmra.mrb[0].mxu0 %v1351
      %v1545 = vpop.f32.mrb[0].mxu0
      %v1546 = vadd.f32 0.0, %v1545
      %v1547 = vpop.f32.mrb[0].mxu0
      %1548 = vmatprep.mubr.f32.mxu0 0.0
      %1549 = vmatmul.mubr.f32.gmra.mrb[0].mxu0 %v1352
      %v1550 = vpop.f32.mrb[0].mxu0
      %v1551 = vadd.f32 0.0, %v1550
      %v1552 = vpop.f32.mrb[0].mxu0
      %1553 = vmatprep.mubr.f32.mxu0 0.0
      %1554 = vmatmul.mubr.f32.gmra.mrb[0].mxu0 %v1353
      %v1555 = vpop.f32.mrb[0].mxu0
      %v1556 = vadd.f32 0.0, %v1555
      %v1557 = vpop.f32.mrb[0].mxu0
      %1558 = vmatprep.mubr.f32.mxu0 0.0
      %1559 = vmatmul.mubr.f32.gmra.mrb[0].mxu0 %v1354
      %v1560 = vpop.f32.mrb[0].mxu0
      %v1561 = vadd.f32 0.0, %v1560
      %v1562 = vpop.f32.mrb[0].mxu0
      %1563 = vmatprep.mubr.f32.mxu0 0.0
      %1564 = vmatmul.mubr.f32.gmra.mrb[0].mxu0 %v1355
      %v1565 = vpop.f32.mrb[0].mxu0
      %v1566 = vadd.f32 0.0, %v1565
      %v1567 = vpop.f32.mrb[0].mxu0
      %1568 = vmatprep.mubr.f32.mxu0 0.0
      %1569 = vmatmul.mubr.f32.gmra.mrb[0].mxu0 %v1356
      %v1570 = vpop.f32.mrb[0].mxu0
      %v1571 = vadd.f32 0.0, %v1570
      %v1572 = vpop.f32.mrb[0].mxu0
      %1573 = vmatprep.mubr.f32.mxu0 0.0
      %1574 = vmatmul.mubr.f32.gmra.mrb[0].mxu0 %v1357
      %v1575 = vpop.f32.mrb[0].mxu0
      %v1576 = vadd.f32 0.0, %v1575
      %v1577 = vpop.f32.mrb[0].mxu0
      %1578 = vmatprep.mubr.f32.mxu0 0.0
      %1579 = vmatmul.mubr.f32.gmra.mrb[0].mxu0 %v1358
      %v1580 = vpop.f32.mrb[0].mxu0
      %v1581 = vadd.f32 0.0, %v1580
      %v1582 = vpop.f32.mrb[0].mxu0
      %1583 = vmatprep.mubr.f32.mxu0 0.0
      %1584 = vmatmul.mubr.f32.gmra.mrb[0].mxu0 %v1359
      %v1585 = vpop.f32.mrb[0].mxu0
      %v1586 = vadd.f32 0.0, %v1585
      %v1587 = vpop.f32.mrb[0].mxu0
      %1588 = vmatprep.mubr.f32.mxu0 0.0
      %1589 = vmatmul.mubr.f32.gmra.mrb[0].mxu0 %v1360
      %v1590 = vpop.f32.mrb[0].mxu0
      %v1591 = vadd.f32 0.0, %v1590
      %v1592 = vpop.f32.mrb[0].mxu0
      %1593 = vmatprep.mubr.f32.mxu0 0.0
      %1594 = vmatmul.mubr.f32.gmra.mrb[0].mxu0 %v1361
      %v1595 = vpop.f32.mrb[0].mxu0
      %v1596 = vadd.f32 0.0, %v1595
      %v1597 = vpop.f32.mrb[0].mxu0
      %1598 = vmatprep.mubr.f32.mxu0 0.0
      %1599 = vmatmul.mubr.f32.gmra.mrb[0].mxu0 %v1362
      %v1600 = vpop.f32.mrb[0].mxu0
      %v1601 = vadd.f32 0.0, %v1600
      %v1602 = vpop.f32.mrb[0].mxu0
      %1603 = vdwg.mxu0
      %v1604 = vxor.u32 %v1446, 2147483648
      %v1605 = vxor.u32 %v1451, 2147483648
      %v1606 = vxor.u32 %v1456, 2147483648
      %v1607 = vxor.u32 %v1461, 2147483648
      %v1608 = vxor.u32 %v1466, 2147483648
      %v1609 = vxor.u32 %v1471, 2147483648
      %v1610 = vxor.u32 %v1476, 2147483648
      %v1611 = vxor.u32 %v1481, 2147483648
      %v1612 = vxor.u32 %v1486, 2147483648
      %v1613 = vxor.u32 %v1491, 2147483648
      %v1614 = vxor.u32 %v1496, 2147483648
      %v1615 = vxor.u32 %v1501, 2147483648
      %v1616 = vxor.u32 %v1506, 2147483648
      %v1617 = vxor.u32 %v1511, 2147483648
      %v1618 = vxor.u32 %v1516, 2147483648
      %v1619 = vxor.u32 %v1521, 2147483648
      %v1620 = vxor.u32 %v1526, 2147483648
      %v1621 = vxor.u32 %v1531, 2147483648
      %v1622 = vxor.u32 %v1536, 2147483648
      %v1623 = vxor.u32 %v1541, 2147483648
      %v1624 = vxor.u32 %v1546, 2147483648
      %v1625 = vxor.u32 %v1551, 2147483648
      %v1626 = vxor.u32 %v1556, 2147483648
      %v1627 = vxor.u32 %v1561, 2147483648
      %v1628 = vxor.u32 %v1566, 2147483648
      %v1629 = vxor.u32 %v1571, 2147483648
      %v1630 = vxor.u32 %v1576, 2147483648
      %v1631 = vxor.u32 %v1581, 2147483648
      %v1632 = vxor.u32 %v1586, 2147483648
      %v1633 = vxor.u32 %v1591, 2147483648
      %v1634 = vxor.u32 %v1596, 2147483648
      %v1635 = vxor.u32 %v1601, 2147483648
      %v1636 = vmul.f32 %v1604, 1.442695
      %v1637 = vpow.pop %v1636
      %v1638 = vmul.f32 %v1605, 1.442695
      %v1639 = vpow.pop %v1638
      %v1640 = vmul.f32 %v1606, 1.442695
      %v1641 = vpow.pop %v1640
      %v1642 = vmul.f32 %v1607, 1.442695
      %v1643 = vpow.pop %v1642
      %v1644 = vmul.f32 %v1608, 1.442695
      %v1645 = vpow.pop %v1644
      %v1646 = vmul.f32 %v1609, 1.442695
      %v1647 = vpow.pop %v1646
      %v1648 = vmul.f32 %v1610, 1.442695
      %v1649 = vpow.pop %v1648
      %v1650 = vmul.f32 %v1611, 1.442695
      %v1651 = vpow.pop %v1650
      %v1652 = vmul.f32 %v1612, 1.442695
      %v1653 = vpow.pop %v1652
      %v1654 = vmul.f32 %v1613, 1.442695
      %v1655 = vpow.pop %v1654
      %v1656 = vmul.f32 %v1614, 1.442695
      %v1657 = vpow.pop %v1656
      %v1658 = vmul.f32 %v1615, 1.442695
      %v1659 = vpow.pop %v1658
      %v1660 = vmul.f32 %v1616, 1.442695
      %v1661 = vpow.pop %v1660
      %v1662 = vmul.f32 %v1617, 1.442695
      %v1663 = vpow.pop %v1662
      %v1664 = vmul.f32 %v1618, 1.442695
      %v1665 = vpow.pop %v1664
      %v1666 = vmul.f32 %v1619, 1.442695
      %v1667 = vpow.pop %v1666
      %v1668 = vmul.f32 %v1620, 1.442695
      %v1669 = vpow.pop %v1668
      %v1670 = vmul.f32 %v1621, 1.442695
      %v1671 = vpow.pop %v1670
      %v1672 = vmul.f32 %v1622, 1.442695
      %v1673 = vpow.pop %v1672
      %v1674 = vmul.f32 %v1623, 1.442695
      %v1675 = vpow.pop %v1674
      %v1676 = vmul.f32 %v1624, 1.442695
      %v1677 = vpow.pop %v1676
      %v1678 = vmul.f32 %v1625, 1.442695
      %v1679 = vpow.pop %v1678
      %v1680 = vmul.f32 %v1626, 1.442695
      %v1681 = vpow.pop %v1680
      %v1682 = vmul.f32 %v1627, 1.442695
      %v1683 = vpow.pop %v1682
      %v1684 = vmul.f32 %v1628, 1.442695
      %v1685 = vpow.pop %v1684
      %v1686 = vmul.f32 %v1629, 1.442695
      %v1687 = vpow.pop %v1686
      %v1688 = vmul.f32 %v1630, 1.442695
      %v1689 = vpow.pop %v1688
      %v1690 = vmul.f32 %v1631, 1.442695
      %v1691 = vpow.pop %v1690
      %v1692 = vmul.f32 %v1632, 1.442695
      %v1693 = vpow.pop %v1692
      %v1694 = vmul.f32 %v1633, 1.442695
      %v1695 = vpow.pop %v1694
      %v1696 = vmul.f32 %v1634, 1.442695
      %v1697 = vpow.pop %v1696
      %v1698 = vmul.f32 %v1635, 1.442695
      %v1699 = vpow.pop %v1698
      %v1700 = vadd.f32 %v1637, 1.0
      %v1701 = vadd.f32 %v1639, 1.0
      %v1702 = vadd.f32 %v1641, 1.0
      %v1703 = vadd.f32 %v1643, 1.0
      %v1704 = vadd.f32 %v1645, 1.0
      %v1705 = vadd.f32 %v1647, 1.0
      %v1706 = vadd.f32 %v1649, 1.0
      %v1707 = vadd.f32 %v1651, 1.0
      %v1708 = vadd.f32 %v1653, 1.0
      %v1709 = vadd.f32 %v1655, 1.0
      %v1710 = vadd.f32 %v1657, 1.0
      %v1711 = vadd.f32 %v1659, 1.0
      %v1712 = vadd.f32 %v1661, 1.0
      %v1713 = vadd.f32 %v1663, 1.0
      %v1714 = vadd.f32 %v1665, 1.0
      %v1715 = vadd.f32 %v1667, 1.0
      %v1716 = vadd.f32 %v1669, 1.0
      %v1717 = vadd.f32 %v1671, 1.0
      %v1718 = vadd.f32 %v1673, 1.0
      %v1719 = vadd.f32 %v1675, 1.0
      %v1720 = vadd.f32 %v1677, 1.0
      %v1721 = vadd.f32 %v1679, 1.0
      %v1722 = vadd.f32 %v1681, 1.0
      %v1723 = vadd.f32 %v1683, 1.0
      %v1724 = vadd.f32 %v1685, 1.0
      %v1725 = vadd.f32 %v1687, 1.0
      %v1726 = vadd.f32 %v1689, 1.0
      %v1727 = vadd.f32 %v1691, 1.0
      %v1728 = vadd.f32 %v1693, 1.0
      %v1729 = vadd.f32 %v1695, 1.0
      %v1730 = vadd.f32 %v1697, 1.0
      %v1731 = vadd.f32 %v1699, 1.0
      %v1732 = vrcp.pop %v1700
      %v1733 = vmul.f32 1.0, %v1732
      %v1734 = vrcp.pop %v1701
      %v1735 = vmul.f32 1.0, %v1734
      %v1736 = vrcp.pop %v1702
      %v1737 = vmul.f32 1.0, %v1736
      %v1738 = vrcp.pop %v1703
      %v1739 = vmul.f32 1.0, %v1738
      %v1740 = vrcp.pop %v1704
      %v1741 = vmul.f32 1.0, %v1740
      %v1742 = vrcp.pop %v1705
      %v1743 = vmul.f32 1.0, %v1742
      %v1744 = vrcp.pop %v1706
      %v1745 = vmul.f32 1.0, %v1744
      %v1746 = vrcp.pop %v1707
      %v1747 = vmul.f32 1.0, %v1746
      %v1748 = vrcp.pop %v1708
      %v1749 = vmul.f32 1.0, %v1748
      %v1750 = vrcp.pop %v1709
      %v1751 = vmul.f32 1.0, %v1750
      %v1752 = vrcp.pop %v1710
      %v1753 = vmul.f32 1.0, %v1752
      %v1754 = vrcp.pop %v1711
      %v1755 = vmul.f32 1.0, %v1754
      %v1756 = vrcp.pop %v1712
      %v1757 = vmul.f32 1.0, %v1756
      %v1758 = vrcp.pop %v1713
      %v1759 = vmul.f32 1.0, %v1758
      %v1760 = vrcp.pop %v1714
      %v1761 = vmul.f32 1.0, %v1760
      %v1762 = vrcp.pop %v1715
      %v1763 = vmul.f32 1.0, %v1762
      %v1764 = vrcp.pop %v1716
      %v1765 = vmul.f32 1.0, %v1764
      %v1766 = vrcp.pop %v1717
      %v1767 = vmul.f32 1.0, %v1766
      %v1768 = vrcp.pop %v1718
      %v1769 = vmul.f32 1.0, %v1768
      %v1770 = vrcp.pop %v1719
      %v1771 = vmul.f32 1.0, %v1770
      %v1772 = vrcp.pop %v1720
      %v1773 = vmul.f32 1.0, %v1772
      %v1774 = vrcp.pop %v1721
      %v1775 = vmul.f32 1.0, %v1774
      %v1776 = vrcp.pop %v1722
      %v1777 = vmul.f32 1.0, %v1776
      %v1778 = vrcp.pop %v1723
      %v1779 = vmul.f32 1.0, %v1778
      %v1780 = vrcp.pop %v1724
      %v1781 = vmul.f32 1.0, %v1780
      %v1782 = vrcp.pop %v1725
      %v1783 = vmul.f32 1.0, %v1782
      %v1784 = vrcp.pop %v1726
      %v1785 = vmul.f32 1.0, %v1784
      %v1786 = vrcp.pop %v1727
      %v1787 = vmul.f32 1.0, %v1786
      %v1788 = vrcp.pop %v1728
      %v1789 = vmul.f32 1.0, %v1788
      %v1790 = vrcp.pop %v1729
      %v1791 = vmul.f32 1.0, %v1790
      %v1792 = vrcp.pop %v1730
      %v1793 = vmul.f32 1.0, %v1792
      %v1794 = vrcp.pop %v1731
      %v1795 = vmul.f32 1.0, %v1794
      %v1796 = vmul.f32 %v1058, %v1733
      %v1797 = vmul.f32 %v1059, %v1735
      %v1798 = vmul.f32 %v1060, %v1737
      %v1799 = vmul.f32 %v1061, %v1739
      %v1800 = vmul.f32 %v1062, %v1741
      %v1801 = vmul.f32 %v1063, %v1743
      %v1802 = vmul.f32 %v1064, %v1745
      %v1803 = vmul.f32 %v1065, %v1747
      %v1804 = vmul.f32 %v1066, %v1749
      %v1805 = vmul.f32 %v1067, %v1751
      %v1806 = vmul.f32 %v1068, %v1753
      %v1807 = vmul.f32 %v1069, %v1755
      %v1808 = vmul.f32 %v1070, %v1757
      %v1809 = vmul.f32 %v1071, %v1759
      %v1810 = vmul.f32 %v1072, %v1761
      %v1811 = vmul.f32 %v1073, %v1763
      %v1812 = vmul.f32 %v1074, %v1765
      %v1813 = vmul.f32 %v1075, %v1767
      %v1814 = vmul.f32 %v1076, %v1769
      %v1815 = vmul.f32 %v1077, %v1771
      %v1816 = vmul.f32 %v1078, %v1773
      %v1817 = vmul.f32 %v1079, %v1775
      %v1818 = vmul.f32 %v1080, %v1777
      %v1819 = vmul.f32 %v1081, %v1779
      %v1820 = vmul.f32 %v1082, %v1781
      %v1821 = vmul.f32 %v1083, %v1783
      %v1822 = vmul.f32 %v1084, %v1785
      %v1823 = vmul.f32 %v1085, %v1787
      %v1824 = vmul.f32 %v1086, %v1789
      %v1825 = vmul.f32 %v1087, %v1791
      %v1826 = vmul.f32 %v1088, %v1793
      %v1827 = vmul.f32 %v1089, %v1795
      %1828 = vst.msk [vmem:[%s302] sm:$0xff] %vm341, %v1796
      %1829 = vst.msk [vmem:[%s302 + $0x8] sm:$0xff] %vm341, %v1797
      %1830 = vst.msk [vmem:[%s302 + $0x10] sm:$0xff] %vm341, %v1798
      %1831 = vst.msk [vmem:[%s302 + $0x18] sm:$0xff] %vm341, %v1799
      %1832 = vst.msk [vmem:[%s302 + $0x20] sm:$0xff] %vm341, %v1800
      %1833 = vst.msk [vmem:[%s302 + $0x28] sm:$0xff] %vm341, %v1801
      %1834 = vst.msk [vmem:[%s302 + $0x30] sm:$0xff] %vm341, %v1802
      %1835 = vst.msk [vmem:[%s302 + $0x38] sm:$0xff] %vm341, %v1803
      %1836 = vst.msk [vmem:[%s302 + $0x40] sm:$0xff] %vm341, %v1804
      %1837 = vst.msk [vmem:[%s302 + $0x48] sm:$0xff] %vm341, %v1805
      %1838 = vst.msk [vmem:[%s302 + $0x50] sm:$0xff] %vm341, %v1806
      %1839 = vst.msk [vmem:[%s302 + $0x58] sm:$0xff] %vm341, %v1807
      %1840 = vst.msk [vmem:[%s302 + $0x60] sm:$0xff] %vm341, %v1808
      %1841 = vst.msk [vmem:[%s302 + $0x68] sm:$0xff] %vm341, %v1809
      %1842 = vst.msk [vmem:[%s302 + $0x70] sm:$0xff] %vm341, %v1810
      %1843 = vst.msk [vmem:[%s302 + $0x78] sm:$0xff] %vm341, %v1811
      %1844 = vst.msk [vmem:[%s302 + $0x80] sm:$0xff] %vm341, %v1812
      %1845 = vst.msk [vmem:[%s302 + $0x88] sm:$0xff] %vm341, %v1813
      %1846 = vst.msk [vmem:[%s302 + $0x90] sm:$0xff] %vm341, %v1814
      %1847 = vst.msk [vmem:[%s302 + $0x98] sm:$0xff] %vm341, %v1815
      %1848 = vst.msk [vmem:[%s302 + $0xa0] sm:$0xff] %vm341, %v1816
      %1849 = vst.msk [vmem:[%s302 + $0xa8] sm:$0xff] %vm341, %v1817
      %1850 = vst.msk [vmem:[%s302 + $0xb0] sm:$0xff] %vm341, %v1818
      %1851 = vst.msk [vmem:[%s302 + $0xb8] sm:$0xff] %vm341, %v1819
      %1852 = vst.msk [vmem:[%s302 + $0xc0] sm:$0xff] %vm341, %v1820
      %1853 = vst.msk [vmem:[%s302 + $0xc8] sm:$0xff] %vm341, %v1821
      %1854 = vst.msk [vmem:[%s302 + $0xd0] sm:$0xff] %vm341, %v1822
      %1855 = vst.msk [vmem:[%s302 + $0xd8] sm:$0xff] %vm341, %v1823
      %1856 = vst.msk [vmem:[%s302 + $0xe0] sm:$0xff] %vm341, %v1824
      %1857 = vst.msk [vmem:[%s302 + $0xe8] sm:$0xff] %vm341, %v1825
      %1858 = vst.msk [vmem:[%s302 + $0xf0] sm:$0xff] %vm341, %v1826
      %1859 = vst.msk [vmem:[%s302 + $0xf8] sm:$0xff] %vm341, %v1827
      %s1860 = smul.u32 32, %s18
      %p1861 = scmp.lt.s32.totalorder %s1860, 63
      %s1862 = scalar_select %p1861, %s1860, 63
      %s1863 = smul.addr %s1862, 8
      %s1864 = scalar_lea.vmem %s7, %s1863
      // Predicated region
      $region49: #{tpu_custom_call.1} parent=47 // pred_check
        %p1865 = pneg %p193
      $region50: #{tpu_custom_call.1} parent=47 // pred_check_branch
        %1867 = sbr.rel (%p1865) target = $region52
      $region51: #{tpu_custom_call.1} parent=47 // pred_region
        %s1868 = smul.u32 32, %s18
      $region52: #{tpu_custom_call.1} parent=47 // pred_fallthru
        _
    $region48: #{tpu_custom_call.1} parent=5 // pred_fallthru
      _
    %p1869 = scmp.le.s32.totalorder 2, %s13
    // Predicated region
    $region53: #{tpu_custom_call.1} parent=5 // pred_check
      %p1870 = pneg %p1869
    $region54: #{tpu_custom_call.1} parent=5 // pred_check_branch
      %1872 = sbr.rel (%p1870) target = $region56
    $region55: #{tpu_custom_call.1} parent=5 // pred_region
      %s1873 = ssub.s32 %s13, 2
      // Predicated region
      $region57: #{tpu_custom_call.1} parent=55 // pred_check
        %p1874 = pneg %p199
      $region58: #{tpu_custom_call.1} parent=55 // pred_check_branch
        %1876 = sbr.rel (%p1874) target = $region60
      $region59: #{tpu_custom_call.1} parent=55 // pred_region
        %s1877 = smul.u32 32, %s19
        %p1878 = scmp.lt.s32.totalorder %s1877, 63
        %s1879 = scalar_select %p1878, %s1877, 63
        %s1880 = smul.addr %s1879, 8
        %s1881 = scalar_lea.vmem %s7, %s1880
      $region60: #{tpu_custom_call.1} parent=55 // pred_fallthru
        _
    $region56: #{tpu_custom_call.1} parent=5 // pred_fallthru
      _
  $region6: #{tpu_custom_call.1} parent=0 // loop_footer
    %s17 = sadd.s32 1, %s13
  $region7: #{tpu_custom_call.1} parent=0 // loop_footer_branch
    %12 = sbr.rel target = $region3
  $region8: #{tpu_custom_call.1} parent=0 // loop_exit
    _

</llo_original>
